<compile_context>
chip_gen: v7x
topology: tpu7x:2x2x1
jax: 0.10.0
libtpu: 0.0.40
codegen_flags: <defaults>
</compile_context>

<pallas_src>
import jax
import jax.numpy as jnp
from jax.experimental import pallas as pl
from jax.experimental.pallas import tpu as pltpu

# ----------------------------- configuration -------------------------------
H = W = 16          # spatial size (original model uses 512; scaled down)
HW = H * W
C_IMG = 3           # RGB
C_IN = 4            # image(3) + mask(1) fed to each feature projection
C_FEAT = 32         # correspondence feature dim (real, pre-padding)
FPAD = 128          # feature dim zero-padded to full MXU contraction depth
CPACK = 16          # compact slab channel width (equals full-array last dim)
TEMPERATURE = 0.01
EPS = 1e-5

# compact slab channel layout (input AND output of the correspondence kernel):
#   [0:3]   query cloth        cloth_mask*image + (1-cloth_mask)
#   [3]     cloth_mask
#   [4:7]   reference cloth    cloth_ref_mask*ref + (1-cloth_ref_mask)
#   [7]     cloth_ref_mask
#   [8:10]  normalized sampling-grid coords (gx, gy)
#   [10:16] zeros
_Q_OFF = 0
_V_OFF = C_IN          # warp values = reference-cloth channels of the slab
_F_OFF = 2 * C_IN      # flow values = coordinate channels of the slab
_N_USED = 2 * C_IN + 2


# ----------------------------- layout helpers ------------------------------
def _to_nhwc(x):
    return jnp.transpose(x, (0, 2, 3, 1))


def _from_flat(x_flat, c, h=H, w=W):
    b = x_flat.shape[0]
    return jnp.transpose(x_flat.reshape(b, h, w, c), (0, 3, 1, 2))


def _resize_nchw(x, h, w):
    b, c = x.shape[0], x.shape[1]
    return jax.image.resize(x, (b, c, h, w), method="bilinear")


def _label_mask(parsing, labels):
    m = jnp.zeros(parsing.shape, jnp.float32)
    for lab in labels:
        m = m + (parsing == lab).astype(jnp.float32)
    return m


def _compose(mask, img):
    # mask*img + (1-mask).  Plain jnp on purpose: XLA fuses this with the
    # surrounding transposes / slab packing (separate Pallas launches here
    # were pure launch + HBM round-trip overhead at these sizes).
    return mask * img + (1.0 - mask)


def l1_mean(a, b):
    # TODO(synk): kept as jnp — at these KB-scale operands a dedicated Pallas
    # reduction is launch-overhead-bound; XLA fuses it with the resizes.
    return jnp.mean(jnp.abs(a - b))


# ------------------ Pallas kernel: correspondence (netCorr core) -----------
def _corr_kernel(x_ref, w_ref, out_ref):
    # One batch element per grid step ("parallel" -> both TCs on v7x).
    x = x_ref[0]                                  # (HW, CPACK) bf16
    w = w_ref[...]                                # (CPACK, 2*FPAD) bf16

    # Fused query|reference projection.  Mean-centering over the feature
    # axis is already folded into w (exact), so the zero-padding of C_FEAT
    # to 128 changes nothing numerically and no in-kernel mean is needed.
    f = jnp.dot(x, w, preferred_element_type=jnp.float32)   # (HW, 2*FPAD) f32
    fq = f[:, :FPAD]                              # lane-aligned 128-wide split
    fr = f[:, FPAD:]

    # L2-normalize in f32; 1/TEMPERATURE folded into the query rsqrt argument
    # (rsqrt((ss+eps)*T^2)) instead of scaling features or the score matrix.
    t2 = TEMPERATURE * TEMPERATURE
    fq = fq * jax.lax.rsqrt((jnp.sum(fq * fq, axis=-1, keepdims=True) + EPS) * t2)
    fr = fr * jax.lax.rsqrt(jnp.sum(fr * fr, axis=-1, keepdims=True) + EPS)

    # Correlation matrix on the MXU: contract the feature dim of both
    # operands (rhs contracts on its last dim -> transposed-weight push, no
    # XLU vxpose).  bf16 feed, f32 accumulate.
    # TODO(synk): 1/T folded into bf16 fq makes logits O(100); validate
    # against an f32-correlation reference with a realistic tolerance.
    scores = jax.lax.dot_general(
        fq.astype(jnp.bfloat16), fr.astype(jnp.bfloat16),
        (((1,), (1,)), ((), ())),
        preferred_element_type=jnp.float32)       # (HW, HW) f32

    # Softmax with DEFERRED normalization: run the value matmul on the
    # un-normalized exp and scale the small (HW, CPACK) result instead of
    # the (HW, HW) attention matrix.
    scores = scores - jnp.max(scores, axis=-1, keepdims=True)
    e = jnp.exp(scores)                           # f32 (v5e has no bf16 EUP)
    # TODO(synk): compute exp in bf16 on v6e/v7x (bf16 EUP) at full resolution.
    denom = jnp.sum(e, axis=-1, keepdims=True)    # (HW, 1) f32, >= 1

    # One value matmul on the compact slab yields BOTH the warped reference
    # pixels (channels 4:7) and the predicted flow (channels 8:10).
    # corr_m is deliberately NOT written.
    out = jnp.dot(e.astype(jnp.bfloat16), x,
                  preferred_element_type=jnp.float32)        # (HW, CPACK) f32
    out_ref[0] = out * pl.reciprocal(denom, approx=True)


def correspondence(packed, w_packed):
    """packed: (B, HW, CPACK) bf16 slab -> (B, HW, CPACK) f32 attn-warped values."""
    b = packed.shape[0]
    # TODO(synk): at full resolution (HW=4096) the (HW, HW) score tile no
    # longer fits VMEM (v7x 64 MiB physical / 32 MiB scoped default) —
    # restructure as an online softmax streamed over reference tiles
    # (flash-attention style) with tq=256, tk=256 (v7x) / 512 (v5e/v6e),
    # double-buffered K tiles, and an explicit vmem_limit_bytes.
    flops = b * (2 * HW * CPACK * 2 * FPAD        # fused projection
                 + 2 * HW * HW * FPAD             # correlation
                 + 2 * HW * HW * CPACK)           # value matmul
    transcendentals = b * (HW * HW + 3 * HW)      # exp + rsqrt/reciprocal
    bytes_accessed = (packed.size * 2 + w_packed.size * 2 * b
                      + b * HW * CPACK * 4)
    return pl.pallas_call(
        _corr_kernel,
        out_shape=jax.ShapeDtypeStruct((b, HW, CPACK), jnp.float32),
        grid_spec=pltpu.PrefetchScalarGridSpec(
            num_scalar_prefetch=0,
            grid=(b,),
            in_specs=[
                pl.BlockSpec((1, HW, CPACK), lambda i: (i, 0, 0)),
                pl.BlockSpec((CPACK, 2 * FPAD), lambda i: (0, 0)),
            ],
            out_specs=pl.BlockSpec((1, HW, CPACK), lambda i: (i, 0, 0)),
        ),
        compiler_params=pltpu.CompilerParams(
            dimension_semantics=("parallel",)),
        cost_estimate=pl.CostEstimate(flops=flops,
                                      transcendentals=transcendentals,
                                      bytes_accessed=bytes_accessed),
    )(packed, w_packed)


# ------------------------------- the model ---------------------------------
class GlobalCorrespondenceModelPallas:
    """Pallas re-implementation of GlobalCorrespondenceModel.forward."""

    def __init__(self, key):
        k1, k2 = jax.random.split(key)
        # Deterministic synthetic weights of the feature projections.
        wq = jax.random.normal(k1, (C_IN, C_FEAT), jnp.float32) * 0.1
        wr = jax.random.normal(k2, (C_IN, C_FEAT), jnp.float32) * 0.1
        # Fold mean-centering over the 32 real features into the weights
        # (exact: mean over the feature axis commutes with a linear map).
        wq = wq - jnp.mean(wq, axis=1, keepdims=True)
        wr = wr - jnp.mean(wr, axis=1, keepdims=True)
        # Embed into ONE combined (CPACK, 2*FPAD) matrix so the kernel does a
        # single fused projection matmul straight from the compact slab:
        # query rows 0:4 -> output cols [0:32], ref rows 4:8 -> [128:160],
        # everything else zero (so the padded features have exactly zero
        # value and do not perturb the L2 norm).
        w = jnp.zeros((CPACK, 2 * FPAD), jnp.float32)
        w = w.at[_Q_OFF:_Q_OFF + C_IN, 0:C_FEAT].set(wq)
        w = w.at[_V_OFF:_V_OFF + C_IN, FPAD:FPAD + C_FEAT].set(wr)
        self.w_packed = w.astype(jnp.bfloat16)

        # normalized sampling-grid coordinates used for the predicted flow
        ys = (jnp.arange(H, dtype=jnp.float32) + 0.5) / H * 2.0 - 1.0
        xs = (jnp.arange(W, dtype=jnp.float32) + 0.5) / W * 2.0 - 1.0
        gy, gx = jnp.meshgrid(ys, xs, indexing="ij")
        self.coords = jnp.stack([gx, gy], axis=-1).reshape(HW, 2)

    # ---------------------------- preprocess --------------------------------
    def preprocess_input(self, data):
        parsing = data['parsing_array']
        parsing_ref = data['parsing_ref_array']
        cloth_ref_mask = _label_mask(parsing_ref, (5, 6, 7))[:, None]   # (B,1,H,W)
        head_mask = _label_mask(parsing, (1, 2, 13))[:, None]
        cloth_mask = _label_mask(parsing, (5, 6, 7))[:, None]

        image = data['image']
        ref = data['ref']
        b = image.shape[0]

        cloth = _compose(cloth_mask, image)
        head = _compose(head_mask, image)
        cloth_ref = _compose(cloth_ref_mask, ref)

        # TODO(synk): FlowCalculator (SMPL mesh rasterization) and
        # F.grid_sample visibility warping have no Pallas equivalent;
        # use an identity flow and the reference cloth mask as visibility.
        ys = jnp.linspace(-1.0, 1.0, H, dtype=jnp.float32)
        xs = jnp.linspace(-1.0, 1.0, W, dtype=jnp.float32)
        gy, gx = jnp.meshgrid(ys, xs, indexing="ij")
        flow_A2B = jnp.broadcast_to(
            jnp.stack([gx, gy], -1)[None], (b, H, W, 2)).astype(jnp.float32)
        vis_mask_B = jnp.floor(cloth_ref_mask)

        symmetric_mask = data['symmetric_mask'][:, None]

        return {
            'real_image': image, 'ref': ref, 'cloth_ref': cloth_ref,
            'cloth_ref_mask': cloth_ref_mask, 'cloth': cloth,
            'cloth_mask': cloth_mask, 'head': head, 'flow_A2B': flow_A2B,
            'vis_mask_B': vis_mask_B, 'symmetric_mask': symmetric_mask,
            'parsing': parsing,
        }

    # --------------------------- generate_fake ------------------------------
    def generate_fake(self, du):
        b = du['cloth'].shape[0]
        cloth = _to_nhwc(du['cloth']).reshape(b, HW, C_IMG)
        cloth_mask = _to_nhwc(du['cloth_mask']).reshape(b, HW, 1)
        cref = _to_nhwc(du['cloth_ref']).reshape(b, HW, C_IMG)
        cref_mask = _to_nhwc(du['cloth_ref_mask']).reshape(b, HW, 1)
        coords = jnp.broadcast_to(self.coords[None], (b, HW, 2))

        # Compact bf16 slab (last dim = 16 = full-array dim, so the (8,128)
        # block rule is satisfied without shipping 118 zero channels to HBM).
        packed = jnp.concatenate(
            [cloth, cloth_mask, cref, cref_mask, coords,
             jnp.zeros((b, HW, CPACK - _N_USED), jnp.float32)],
            axis=-1).astype(jnp.bfloat16)

        out = correspondence(packed, self.w_packed)         # (B, HW, CPACK) f32
        warp_flat = out[:, :, _V_OFF:_V_OFF + C_IMG]        # attn @ cloth_ref
        flow_flat = out[:, :, _F_OFF:_F_OFF + 2]            # attn @ coords

        warp_full = _from_flat(warp_flat, C_IMG)            # NCHW (B,3,H,W)
        flow_full = flow_flat.reshape(b, H, W, 2)           # NHWC grid coords

        # multi-scale decoder outputs (original: 64 / 128 / 256 of a 512 image)
        warp_out = [
            _resize_nchw(warp_full, H // 8, W // 8),
            _resize_nchw(warp_full, H // 4, W // 4),
            _resize_nchw(warp_full, H // 2, W // 2),
        ]
        flow128 = jax.image.resize(flow_full, (b, H // 4, W // 4, 2), "bilinear")
        flow256 = jax.image.resize(flow_full, (b, H // 2, W // 2, 2), "bilinear")

        img_size = H  # original uses 512 == full image size
        gen = {
            'warp_out': warp_out,
            # TODO(synk): corr_m (B, HW, HW) deliberately not materialized —
            # its only consumer (SMPLLossPixel) is a stub; this removes the
            # largest HBM writeback of the model.
            'flow128': flow128,
            'flow256': flow256,
            'fake_image': _resize_nchw(warp_out[0], img_size, img_size),
            'fake128': _resize_nchw(warp_out[1], img_size, img_size),
            'fake256': _resize_nchw(warp_out[2], img_size, img_size),
            'fake512': _resize_nchw(warp_out[2], img_size, img_size),
        }
        return gen

    # ----------------------- compute_generator_loss -------------------------
    def compute_generator_loss(self, du):
        G = {}
        gen = self.generate_fake(du)

        # ---- 1/8 scale (max_num = 3) ----
        h8, w8 = H // 8, W // 8
        scale_cloth = _resize_nchw(du['cloth'], h8, w8)
        warp_cloth = gen['warp_out'][0]
        loss_l1_64 = l1_mean(warp_cloth, scale_cloth)
        G['l1_64'] = loss_l1_64 * 1.0
        # TODO(synk): VGGLoss (pretrained perceptual net) has no Pallas equivalent.
        G['vgg_64'] = jnp.float32(0.0)
        # TODO(synk): SMPLLossPixel (grid_sample-based warping of corr_m) not implemented.
        G['smpl_64'] = jnp.float32(0.0) * 10.0

        # ---- 1/4 and 1/2 scales ----
        loss_l1 = jnp.float32(0.0)
        loss_smpl = jnp.float32(0.0)
        flow_A2B_nchw = jnp.transpose(du['flow_A2B'], (0, 3, 1, 2))
        for max_num, warp_idx, flow_key in ((2, 1, 'flow128'), (1, 2, 'flow256')):
            s = 2 ** max_num
            hh, ww = H // s, W // s
            scale_cloth = _resize_nchw(du['cloth'], hh, ww)
            warp_cloth = gen['warp_out'][warp_idx]
            loss_l1 = loss_l1 + l1_mean(warp_cloth, scale_cloth)

            scale_vis = _resize_nchw(du['vis_mask_B'], hh, ww)
            flow_pred = jnp.transpose(gen[flow_key], (0, 3, 1, 2))   # (B,2,h,w)
            scale_flow = _resize_nchw(flow_A2B_nchw, hh, ww)
            loss_smpl = loss_smpl + l1_mean(flow_pred * scale_vis,
                                            scale_flow * scale_vis)

        G['smpl'] = loss_smpl * 30.0
        G['full_l1'] = loss_l1 * 5.0
        # TODO(synk): contextual / VGG losses at full scales not implemented.
        G['full_vgg'] = jnp.float32(0.0)
        return G, gen

    # ------------------------------- forward --------------------------------
    def forward(self, data):
        du = self.preprocess_input(data)
        g_loss, gen = self.compute_generator_loss(du)
        out = {
            'fake_image': gen['fake_image'],
            'fake128': gen['fake128'],
            'fake256': gen['fake256'],
            'fake512': gen['fake512'],
        }
        return g_loss, out


# --------------------------------- main -------------------------------------
if __name__ == "__main__":
    key = jax.random.PRNGKey(0)
    kmodel, kimg, kref, kp, kpr, ksym = jax.random.split(key, 6)
    B = 2
    data = {
        'image': jax.random.uniform(kimg, (B, 3, H, W), jnp.float32, -1.0, 1.0),
        'ref': jax.random.uniform(kref, (B, 3, H, W), jnp.float32, -1.0, 1.0),
        'parsing_array': jax.random.randint(kp, (B, H, W), 0, 14),
        'parsing_ref_array': jax.random.randint(kpr, (B, H, W), 0, 14),
        'symmetric_mask': (jax.random.uniform(ksym, (B, H, W)) > 0.5).astype(jnp.float32),
    }

    model = GlobalCorrespondenceModelPallas(kmodel)
    g_loss, out = model.forward(data)
    jax.block_until_ready((g_loss, out))
    print("KERNEL_OK")
</pallas_src>

<mosaic_0001>
module attributes {stable_mosaic.version = 11 : i64} {
  func.func @_corr_kernel(%arg0: i32, %arg1: memref<1x256x16xbf16, #tpu.memory_space<vmem>>, %arg2: memref<16x256xbf16, #tpu.memory_space<vmem>>, %arg3: memref<1x256x16xf32, #tpu.memory_space<vmem>>) attributes {dimension_semantics = [#tpu.dimension_semantics<parallel>], iteration_bounds = array<i64: 2>, scalar_prefetch = 0 : i64, scratch_operands = 0 : i64, tpu.core_type = #tpu.core_type<tc>, window_params = [{transform_indices = @transform_0, window_bounds = array<i64: 1, 256, 16>}, {pipeline_mode = #tpu.pipeline_mode<synchronous>, transform_indices = @transform_1, window_bounds = array<i64: 16, 256>}, {transform_indices = @transform_2, window_bounds = array<i64: 1, 256, 16>}]} {
    %c0 = arith.constant 0 : index
    %c0_0 = arith.constant 0 : index
    %c0_1 = arith.constant 0 : index
    %0 = vector.load %arg1[%c0, %c0_0, %c0_1] : memref<1x256x16xbf16, #tpu.memory_space<vmem>>, vector<1x256x16xbf16>
    %1 = vector.shape_cast %0 : vector<1x256x16xbf16> to vector<256x16xbf16>
    %c0_2 = arith.constant 0 : index
    %c0_3 = arith.constant 0 : index
    %2 = vector.load %arg2[%c0_2, %c0_3] : memref<16x256xbf16, #tpu.memory_space<vmem>>, vector<16x256xbf16>
    %cst = arith.constant dense<0.000000e+00> : vector<256x256xf32>
    %3 = tpu.matmul %1, %2, %cst {dimension_numbers = #tpu.dot_dimension_numbers<[1], [0], [0], [1], [0, 0, 1, 1], [], []>} : vector<256x16xbf16>, vector<16x256xbf16>, vector<256x256xf32> -> vector<256x256xf32>
    %4 = vector.extract_strided_slice %3 {offsets = [0, 0], sizes = [256, 128], strides = [1, 1]} : vector<256x256xf32> to vector<256x128xf32>
    %5 = vector.extract_strided_slice %3 {offsets = [0, 128], sizes = [256, 128], strides = [1, 1]} : vector<256x256xf32> to vector<256x128xf32>
    %6 = arith.mulf %4, %4 : vector<256x128xf32>
    %cst_4 = arith.constant dense<0.000000e+00> : vector<256xf32>
    %7 = vector.multi_reduction <add>, %6, %cst_4 [1] : vector<256x128xf32> to vector<256xf32>
    %8 = vector.shape_cast %7 : vector<256xf32> to vector<256x1xf32>
    %cst_5 = arith.constant 9.99999974E-6 : f32
    %9 = vector.broadcast %cst_5 : f32 to vector<256x1xf32>
    %10 = arith.addf %8, %9 : vector<256x1xf32>
    %cst_6 = arith.constant 9.99999974E-5 : f32
    %11 = vector.broadcast %cst_6 : f32 to vector<256x1xf32>
    %12 = arith.mulf %10, %11 : vector<256x1xf32>
    %13 = math.rsqrt %12 : vector<256x1xf32>
    %14 = vector.broadcast %13 : vector<256x1xf32> to vector<256x128xf32>
    %15 = arith.mulf %4, %14 : vector<256x128xf32>
    %16 = arith.mulf %5, %5 : vector<256x128xf32>
    %cst_7 = arith.constant dense<0.000000e+00> : vector<256xf32>
    %17 = vector.multi_reduction <add>, %16, %cst_7 [1] : vector<256x128xf32> to vector<256xf32>
    %18 = vector.shape_cast %17 : vector<256xf32> to vector<256x1xf32>
    %cst_8 = arith.constant 9.99999974E-6 : f32
    %19 = vector.broadcast %cst_8 : f32 to vector<256x1xf32>
    %20 = arith.addf %18, %19 : vector<256x1xf32>
    %21 = math.rsqrt %20 : vector<256x1xf32>
    %22 = vector.broadcast %21 : vector<256x1xf32> to vector<256x128xf32>
    %23 = arith.mulf %5, %22 : vector<256x128xf32>
    %24 = arith.truncf %15 : vector<256x128xf32> to vector<256x128xbf16>
    %25 = arith.truncf %23 : vector<256x128xf32> to vector<256x128xbf16>
    %cst_9 = arith.constant dense<0.000000e+00> : vector<256x256xf32>
    %26 = tpu.matmul %24, %25, %cst_9 {dimension_numbers = #tpu.dot_dimension_numbers<[1], [1], [0], [0], [0, 0, 1, 0], [], []>} : vector<256x128xbf16>, vector<256x128xbf16>, vector<256x256xf32> -> vector<256x256xf32>
    %cst_10 = arith.constant dense<0xFF800000> : vector<256xf32>
    %27 = vector.multi_reduction <maximumf>, %26, %cst_10 [1] : vector<256x256xf32> to vector<256xf32>
    %28 = vector.shape_cast %27 : vector<256xf32> to vector<256x1xf32>
    %29 = vector.broadcast %28 : vector<256x1xf32> to vector<256x256xf32>
    %30 = arith.subf %26, %29 : vector<256x256xf32>
    %31 = math.exp %30 : vector<256x256xf32>
    %cst_11 = arith.constant dense<0.000000e+00> : vector<256xf32>
    %32 = vector.multi_reduction <add>, %31, %cst_11 [1] : vector<256x256xf32> to vector<256xf32>
    %33 = vector.shape_cast %32 : vector<256xf32> to vector<256x1xf32>
    %34 = arith.truncf %31 : vector<256x256xf32> to vector<256x256xbf16>
    %cst_12 = arith.constant dense<0.000000e+00> : vector<256x16xf32>
    %35 = tpu.matmul %34, %1, %cst_12 {dimension_numbers = #tpu.dot_dimension_numbers<[1], [0], [0], [1], [0, 0, 1, 1], [], []>} : vector<256x256xbf16>, vector<256x16xbf16>, vector<256x16xf32> -> vector<256x16xf32>
    %36 = tpu.reciprocal %33 {approx = true} : vector<256x1xf32> -> vector<256x1xf32>
    %37 = vector.broadcast %36 : vector<256x1xf32> to vector<256x16xf32>
    %38 = arith.mulf %35, %37 : vector<256x16xf32>
    %c0_13 = arith.constant 0 : index
    %c0_14 = arith.constant 0 : index
    %c0_15 = arith.constant 0 : index
    %39 = vector.load %arg3[%c0_13, %c0_14, %c0_15] : memref<1x256x16xf32, #tpu.memory_space<vmem>>, vector<1x256x16xf32>
    %40 = vector.shape_cast %39 : vector<1x256x16xf32> to vector<256x16xf32>
    %41 = vector.shape_cast %38 : vector<256x16xf32> to vector<1x256x16xf32>
    tpu.vector_store %arg3[%c0_13, %c0_14, %c0_15], %41 {strides = array<i32>} : memref<1x256x16xf32, #tpu.memory_space<vmem>>, vector<1x256x16xf32>,
    return
  }
  func.func @transform_0(%arg0: i32) -> (i32, i32, i32) {
    %c0_i32 = arith.constant 0 : i32
    %c0_i32_0 = arith.constant 0 : i32
    %c0_i32_1 = arith.constant 0 : i32
    return %arg0, %c0_i32, %c0_i32_0 : i32, i32, i32
  }
  func.func @transform_1(%arg0: i32) -> (i32, i32) {
    %c0_i32 = arith.constant 0 : i32
    %c0_i32_0 = arith.constant 0 : i32
    %c0_i32_1 = arith.constant 0 : i32
    return %c0_i32, %c0_i32_0 : i32, i32
  }
  func.func @transform_2(%arg0: i32) -> (i32, i32, i32) {
    %c0_i32 = arith.constant 0 : i32
    %c0_i32_0 = arith.constant 0 : i32
    %c0_i32_1 = arith.constant 0 : i32
    return %arg0, %c0_i32, %c0_i32_0 : i32, i32, i32
  }
}

</mosaic_0001>

<llo_original>
// kernel: tpu_custom_call.1
$region0: #{tpu_custom_call.1}
  #allocation0 [shape = 'u32[]', space=smem, size = 0x4, offset = 0x4, fixed_abs, tag = 'smem constant byte address 0x4 - core index']
  #allocation1 [shape = 'u32[144,128]{1,0:T(1,128)}', space=vmem, size = 0x12000, scoped, tag = 'internal scratch']
  %s0 = inlined_call_operand.vmem [shape: bf16[2,256,16], index: 0, kind: input, shape index: {}]
  %s1 = inlined_call_operand.vmem [shape: bf16[16,256], index: 1, kind: input, shape index: {}]
  %s2 = inlined_call_operand.vmem [shape: f32[2,256,16], index: 2, kind: output, shape index: {}]
  %s3 = sld [smem:[#allocation0]]
  $region41: #{tpu_custom_call.1} parent=0
    _
  %s5 = ssub.s32 1, %s3
  %s6 = scalar_select 0, %s5, %s3
  loop: start=0, step=1, limit=4
  $region2: #{tpu_custom_call.1} parent=0 // loop_pre_header
    _
  $region3: #{tpu_custom_call.1} parent=0 // loop_header
    %s8 = sphi 0, %s12
    %p9 = scmp.ge.s32.totalorder %s8, 4
    %s18 = sphi 0, %s20
    %s21 = sphi 0, %s18
    %s22 = sphi 0, %s21
    %s38 = sphi 0, %s22
    %s42 = sphi 0, %s42
    %s44 = sphi 0, %s42
    %s45 = sphi 0, %s44
    %s59 = sphi 0, %s45
    %s65 = sphi 0, %s67
    %s68 = sphi 0, %s65
    %s69 = sphi 0, %s68
    %s85 = sphi 0, %s69
  $region4: #{tpu_custom_call.1} parent=0 // loop_header_branch
    %11 = sbr.rel (%p9) target = $region8
  $region5: #{tpu_custom_call.1} parent=0 // loop_body
    %s13 = ssub.s32 %s8, 1
    %s14 = ssub.s32 %s8, 2
    %s15 = sadd.s32 %s8, 1
    %s16 = ssub.s32 %s8, %s15
    %p17 = scmp.eq.s32.totalorder %s16, 0
    %s19 = sadd.s32 %s18, 1
    %s20 = scalar_select %p17, %s18, %s19
    %p23 = pneg %p17
    %p24 = scmp.eq.s32.totalorder %s8, 1
    %p25 = por %p23, %p24
    %p26 = scmp.ne.s32.totalorder %s18, %s21
    %p27 = scmp.eq.s32.totalorder %s8, 0
    %p28 = por %p26, %p27
    %p29 = scmp.ne.s32.totalorder %s18, %s21
    %p30 = scmp.eq.s32.totalorder %s13, 1
    %p31 = por %p29, %p30
    %p32 = scmp.ne.s32.totalorder %s21, %s22
    %p33 = scmp.eq.s32.totalorder %s13, 0
    %p34 = por %p32, %p33
    %p35 = scmp.ne.s32.totalorder %s21, %s22
    %p36 = scmp.eq.s32.totalorder %s14, 1
    %p37 = por %p35, %p36
    %p39 = scmp.ne.s32.totalorder %s22, %s38
    %p40 = scmp.eq.s32.totalorder %s14, 0
    %p41 = por %p39, %p40
    %s43 = sadd.s32 %s42, 1
    %p46 = scmp.eq.s32.totalorder %s8, 1
    %p47 = scmp.ne.s32.totalorder %s42, %s44
    %p48 = scmp.eq.s32.totalorder %s8, 0
    %p49 = por %p47, %p48
    %p50 = scmp.ne.s32.totalorder %s42, %s44
    %p51 = scmp.eq.s32.totalorder %s13, 1
    %p52 = por %p50, %p51
    %p53 = scmp.ne.s32.totalorder %s44, %s45
    %p54 = scmp.eq.s32.totalorder %s13, 0
    %p55 = por %p53, %p54
    %p56 = scmp.ne.s32.totalorder %s44, %s45
    %p57 = scmp.eq.s32.totalorder %s14, 1
    %p58 = por %p56, %p57
    %p60 = scmp.ne.s32.totalorder %s45, %s59
    %p61 = scmp.eq.s32.totalorder %s14, 0
    %p62 = por %p60, %p61
    %s63 = ssub.s32 %s8, %s15
    %p64 = scmp.eq.s32.totalorder %s63, 0
    %s66 = sadd.s32 %s65, 1
    %s67 = scalar_select %p64, %s65, %s66
    %p70 = pneg %p64
    %p71 = scmp.eq.s32.totalorder %s8, 1
    %p72 = por %p70, %p71
    %p73 = scmp.ne.s32.totalorder %s65, %s68
    %p74 = scmp.eq.s32.totalorder %s8, 0
    %p75 = por %p73, %p74
    %p76 = scmp.ne.s32.totalorder %s65, %s68
    %p77 = scmp.eq.s32.totalorder %s13, 1
    %p78 = por %p76, %p77
    %p79 = scmp.ne.s32.totalorder %s68, %s69
    %p80 = scmp.eq.s32.totalorder %s13, 0
    %p81 = por %p79, %p80
    %p82 = scmp.ne.s32.totalorder %s68, %s69
    %p83 = scmp.eq.s32.totalorder %s14, 1
    %p84 = por %p82, %p83
    %p86 = scmp.ne.s32.totalorder %s69, %s85
    %p87 = scmp.eq.s32.totalorder %s14, 0
    %p88 = por %p86, %p87
    %p89 = scmp.le.s32.totalorder 1, %s8
    %p90 = scmp.lt.s32.totalorder %s8, 3
    %p91 = pnand %p89, %p90
    %p92 = pneg %p91
    // Predicated region
    $region9: #{tpu_custom_call.1} parent=5 // pred_check
      _
    $region10: #{tpu_custom_call.1} parent=5 // pred_check_branch
      %94 = sbr.rel (%p91) target = $region12
    $region11: #{tpu_custom_call.1} parent=5 // pred_region
      %s95 = ssub.s32 %s8, 1
      // Predicated region
      $region13: #{tpu_custom_call.1} parent=11 // pred_check
        %p96 = pneg %p55
      $region14: #{tpu_custom_call.1} parent=11 // pred_check_branch
        %98 = sbr.rel (%p96) target = $region16
      $region15: #{tpu_custom_call.1} parent=11 // pred_region
        _
      $region16: #{tpu_custom_call.1} parent=11 // pred_fallthru
        _
    $region12: #{tpu_custom_call.1} parent=5 // pred_fallthru
      _
    %p99 = scmp.lt.s32.totalorder %s8, 2
    // Predicated region
    $region17: #{tpu_custom_call.1} parent=5 // pred_check
      %p100 = pneg %p99
    $region18: #{tpu_custom_call.1} parent=5 // pred_check_branch
      %102 = sbr.rel (%p100) target = $region20
    $region19: #{tpu_custom_call.1} parent=5 // pred_region
      // Predicated region
      $region21: #{tpu_custom_call.1} parent=19 // pred_check
        %p103 = pneg %p28
      $region22: #{tpu_custom_call.1} parent=19 // pred_check_branch
        %105 = sbr.rel (%p103) target = $region24
      $region23: #{tpu_custom_call.1} parent=19 // pred_region
        %p106 = scmp.lt.s32.totalorder %s8, 1
        %s107 = scalar_select %p106, %s8, 1
        %s108 = smul.addr %s107, 32
        %s109 = smul.addr %s108, 4
        %s110 = scalar_lea.vmem %s0, %s109
      $region24: #{tpu_custom_call.1} parent=19 // pred_fallthru
        _
    $region20: #{tpu_custom_call.1} parent=5 // pred_fallthru
      _
    %p111 = scmp.le.s32.totalorder 1, %s8
    %p112 = scmp.lt.s32.totalorder %s8, 3
    %p113 = pnand %p111, %p112
    %p114 = pneg %p113
    // Predicated region
    $region25: #{tpu_custom_call.1} parent=5 // pred_check
      _
    $region26: #{tpu_custom_call.1} parent=5 // pred_check_branch
      %116 = sbr.rel (%p113) target = $region28
    $region27: #{tpu_custom_call.1} parent=5 // pred_region
      %s117 = ssub.s32 %s8, 1
      %p118 = scmp.lt.s32.totalorder %s13, 1
      %s119 = scalar_select %p118, %s13, 1
      %s120 = smul.addr %s119, 32
      %s121 = smul.addr %s120, 4
      %s122 = scalar_lea.vmem %s0, %s121
      %p123 = pneg %p34
      %p124 = pneg %p31
      %p125 = pneg %p55
      %p126 = pneg %p52
      %p127 = pneg %p81
      %p128 = pneg %p78
      %p129 = scmp.lt.s32.totalorder %s13, 1
      %s130 = scalar_select %p129, %s13, 1
      %s131 = smul.addr %s130, 32
      %s132 = smul.addr %s131, 8
      %s133 = scalar_lea.vmem %s2, %s132
      %p134 = scmp.lt.s32.totalorder %s13, 1
      %s135 = scalar_select %p134, %s13, 1
      %s136 = smul.addr %s135, 32
      %s137 = smul.addr %s136, 4
      %s138 = scalar_lea.vmem %s0, %s137
      %p139 = scmp.lt.s32.totalorder %s13, 1
      %s140 = scalar_select %p139, %s13, 1
      %s141 = smul.addr %s140, 32
      %s142 = smul.addr %s141, 8
      %s143 = scalar_lea.vmem %s2, %s142
      %v145 = vld [vmem:[%s138] sm:$0xf]
      %v146 = vld [vmem:[%s138 + $0x4] sm:$0xf]
      %v147 = vld [vmem:[%s138 + $0x8] sm:$0xf]
      %v148 = vld [vmem:[%s138 + $0xc] sm:$0xf]
      %v149 = vld [vmem:[%s138 + $0x10] sm:$0xf]
      %v150 = vld [vmem:[%s138 + $0x14] sm:$0xf]
      %v151 = vld [vmem:[%s138 + $0x18] sm:$0xf]
      %v152 = vld [vmem:[%s138 + $0x1c] sm:$0xf]
      %v153 = vld [vmem:[%s138 + $0x20] sm:$0xf]
      %v154 = vld [vmem:[%s138 + $0x24] sm:$0xf]
      %v155 = vld [vmem:[%s138 + $0x28] sm:$0xf]
      %v156 = vld [vmem:[%s138 + $0x2c] sm:$0xf]
      %v157 = vld [vmem:[%s138 + $0x30] sm:$0xf]
      %v158 = vld [vmem:[%s138 + $0x34] sm:$0xf]
      %v159 = vld [vmem:[%s138 + $0x38] sm:$0xf]
      %v160 = vld [vmem:[%s138 + $0x3c] sm:$0xf]
      %v161 = vld [vmem:[%s138 + $0x40] sm:$0xf]
      %v162 = vld [vmem:[%s138 + $0x44] sm:$0xf]
      %v163 = vld [vmem:[%s138 + $0x48] sm:$0xf]
      %v164 = vld [vmem:[%s138 + $0x4c] sm:$0xf]
      %v165 = vld [vmem:[%s138 + $0x50] sm:$0xf]
      %v166 = vld [vmem:[%s138 + $0x54] sm:$0xf]
      %v167 = vld [vmem:[%s138 + $0x58] sm:$0xf]
      %v168 = vld [vmem:[%s138 + $0x5c] sm:$0xf]
      %v169 = vld [vmem:[%s138 + $0x60] sm:$0xf]
      %v170 = vld [vmem:[%s138 + $0x64] sm:$0xf]
      %v171 = vld [vmem:[%s138 + $0x68] sm:$0xf]
      %v172 = vld [vmem:[%s138 + $0x6c] sm:$0xf]
      %v173 = vld [vmem:[%s138 + $0x70] sm:$0xf]
      %v174 = vld [vmem:[%s138 + $0x74] sm:$0xf]
      %v175 = vld [vmem:[%s138 + $0x78] sm:$0xf]
      %v176 = vld [vmem:[%s138 + $0x7c] sm:$0xf]
      %v177 = vld [vmem:[%s1] sm:$0xff]
      %v178 = vld [vmem:[%s1 + $0x8] sm:$0xff]
      %v211 = vunpack.c.l.b16 %v145
      %v212 = vunpack.c.l.b16 %v146
      %v213 = vunpack.c.l.b16 %v147
      %v214 = vunpack.c.l.b16 %v148
      %v215 = vunpack.c.l.b16 %v149
      %v216 = vunpack.c.l.b16 %v150
      %v217 = vunpack.c.l.b16 %v151
      %v218 = vunpack.c.l.b16 %v152
      %v219 = vunpack.c.l.b16 %v153
      %v220 = vunpack.c.l.b16 %v154
      %v221 = vunpack.c.l.b16 %v155
      %v222 = vunpack.c.l.b16 %v156
      %v223 = vunpack.c.l.b16 %v157
      %v224 = vunpack.c.l.b16 %v158
      %v225 = vunpack.c.l.b16 %v159
      %v226 = vunpack.c.l.b16 %v160
      %v227 = vunpack.c.l.b16 %v161
      %v228 = vunpack.c.l.b16 %v162
      %v229 = vunpack.c.l.b16 %v163
      %v230 = vunpack.c.l.b16 %v164
      %v231 = vunpack.c.l.b16 %v165
      %v232 = vunpack.c.l.b16 %v166
      %v233 = vunpack.c.l.b16 %v167
      %v234 = vunpack.c.l.b16 %v168
      %v235 = vunpack.c.l.b16 %v169
      %v236 = vunpack.c.l.b16 %v170
      %v237 = vunpack.c.l.b16 %v171
      %v238 = vunpack.c.l.b16 %v172
      %v239 = vunpack.c.l.b16 %v173
      %v240 = vunpack.c.l.b16 %v174
      %v241 = vunpack.c.l.b16 %v175
      %v242 = vunpack.c.l.b16 %v176
      %v243 = vpack.c.b16 %v212, %v211
      %v244 = vpack.c.b16 %v214, %v213
      %v245 = vpack.c.b16 %v216, %v215
      %v246 = vpack.c.b16 %v218, %v217
      %v247 = vpack.c.b16 %v220, %v219
      %v248 = vpack.c.b16 %v222, %v221
      %v249 = vpack.c.b16 %v224, %v223
      %v250 = vpack.c.b16 %v226, %v225
      %v251 = vpack.c.b16 %v228, %v227
      %v252 = vpack.c.b16 %v230, %v229
      %v253 = vpack.c.b16 %v232, %v231
      %v254 = vpack.c.b16 %v234, %v233
      %v255 = vpack.c.b16 %v236, %v235
      %v256 = vpack.c.b16 %v238, %v237
      %v257 = vpack.c.b16 %v240, %v239
      %v258 = vpack.c.b16 %v242, %v241
      %v261 = vunpack.c.l.b16 %v177
      %v262 = vunpack.c.h.b16 %v177
      %v263 = vunpack.c.l.b16 %v178
      %v264 = vunpack.c.h.b16 %v178
      %v265 = vpack.c.b16 %v263, %v261
      %v266 = vpack.c.b16 %v264, %v262
      %vm269 = vcmask 130048
      %v271 = vsel %vm269, %v243, 0
      %v274 = vsel %vm269, %v244, 0
      %v277 = vsel %vm269, %v245, 0
      %v280 = vsel %vm269, %v246, 0
      %v283 = vsel %vm269, %v247, 0
      %v286 = vsel %vm269, %v248, 0
      %v289 = vsel %vm269, %v249, 0
      %v292 = vsel %vm269, %v250, 0
      %v295 = vsel %vm269, %v251, 0
      %v298 = vsel %vm269, %v252, 0
      %v301 = vsel %vm269, %v253, 0
      %v304 = vsel %vm269, %v254, 0
      %v307 = vsel %vm269, %v255, 0
      %v310 = vsel %vm269, %v256, 0
      %v313 = vsel %vm269, %v257, 0
      %v316 = vsel %vm269, %v258, 0
      %318 = vmatprep.subr.bf16.mxu0 %v266
      %319 = vmatpush1.bf16.msra.mxu0 %v265
      %320 = vmatprep.subr.bf16.mxu0 0
      %321 = vmatpush1.bf16.msra.mxu0 0
      %322 = vmatprep.subr.bf16.mxu0 0
      %323 = vmatpush1.bf16.msra.mxu0 0
      %324 = vmatprep.subr.bf16.mxu0 0
      %325 = vmatpush1.bf16.msra.mxu0 0
      %326 = vmatprep.subr.bf16.mxu0 0
      %327 = vmatpush1.bf16.msra.mxu0 0
      %328 = vmatprep.subr.bf16.mxu0 0
      %329 = vmatpush1.bf16.msra.mxu0 0
      %330 = vmatprep.subr.bf16.mxu0 0
      %331 = vmatpush1.bf16.msra.mxu0 0
      %332 = vmatprep.subr.bf16.mxu0 0
      %333 = vmatpush1.bf16.msra.mxu0 0
      %334 = vmatprep.subr.bf16.mxu0 0
      %335 = vmatpush1.bf16.msra.mxu0 0
      %336 = vmatprep.subr.bf16.mxu0 0
      %337 = vmatpush1.bf16.msra.mxu0 0
      %338 = vmatprep.subr.bf16.mxu0 0
      %339 = vmatpush1.bf16.msra.mxu0 0
      %340 = vmatprep.subr.bf16.mxu0 0
      %341 = vmatpush1.bf16.msra.mxu0 0
      %342 = vmatprep.subr.bf16.mxu0 0
      %343 = vmatpush1.bf16.msra.mxu0 0
      %344 = vmatprep.subr.bf16.mxu0 0
      %345 = vmatpush1.bf16.msra.mxu0 0
      %346 = vmatprep.subr.bf16.mxu0 0
      %347 = vmatpush1.bf16.msra.mxu0 0
      %348 = vmatprep.subr.bf16.mxu0 0
      %349 = vmatpush1.bf16.msra.mxu0 0
      %350 = vmatprep.mubr.bf16.mxu0 0
      %351 = vmatmul.mubr.bf16.gmra.mrb[0].mxu0 %v271
      %v352 = vpop.f32.mrb[0].mxu0
      %v353 = vadd.f32 0.0, %v352
      %v354 = vpop.f32.mrb[0].mxu0
      %v355 = vadd.f32 0.0, %v354
      %v356 = vpop.f32.mrb[0].mxu0
      %v357 = vadd.f32 0.0, %v356
      %v358 = vpop.f32.mrb[0].mxu0
      %v359 = vadd.f32 0.0, %v358
      %360 = vmatprep.mubr.bf16.mxu0 0
      %361 = vmatmul.mubr.bf16.gmra.mrb[0].mxu0 %v274
      %v362 = vpop.f32.mrb[0].mxu0
      %v363 = vadd.f32 0.0, %v362
      %v364 = vpop.f32.mrb[0].mxu0
      %v365 = vadd.f32 0.0, %v364
      %v366 = vpop.f32.mrb[0].mxu0
      %v367 = vadd.f32 0.0, %v366
      %v368 = vpop.f32.mrb[0].mxu0
      %v369 = vadd.f32 0.0, %v368
      %370 = vmatprep.mubr.bf16.mxu0 0
      %371 = vmatmul.mubr.bf16.gmra.mrb[0].mxu0 %v277
      %v372 = vpop.f32.mrb[0].mxu0
      %v373 = vadd.f32 0.0, %v372
      %v374 = vpop.f32.mrb[0].mxu0
      %v375 = vadd.f32 0.0, %v374
      %v376 = vpop.f32.mrb[0].mxu0
      %v377 = vadd.f32 0.0, %v376
      %v378 = vpop.f32.mrb[0].mxu0
      %v379 = vadd.f32 0.0, %v378
      %380 = vmatprep.mubr.bf16.mxu0 0
      %381 = vmatmul.mubr.bf16.gmra.mrb[0].mxu0 %v280
      %v382 = vpop.f32.mrb[0].mxu0
      %v383 = vadd.f32 0.0, %v382
      %v384 = vpop.f32.mrb[0].mxu0
      %v385 = vadd.f32 0.0, %v384
      %v386 = vpop.f32.mrb[0].mxu0
      %v387 = vadd.f32 0.0, %v386
      %v388 = vpop.f32.mrb[0].mxu0
      %v389 = vadd.f32 0.0, %v388
      %390 = vmatprep.mubr.bf16.mxu0 0
      %391 = vmatmul.mubr.bf16.gmra.mrb[0].mxu0 %v283
      %v392 = vpop.f32.mrb[0].mxu0
      %v393 = vadd.f32 0.0, %v392
      %v394 = vpop.f32.mrb[0].mxu0
      %v395 = vadd.f32 0.0, %v394
      %v396 = vpop.f32.mrb[0].mxu0
      %v397 = vadd.f32 0.0, %v396
      %v398 = vpop.f32.mrb[0].mxu0
      %v399 = vadd.f32 0.0, %v398
      %400 = vmatprep.mubr.bf16.mxu0 0
      %401 = vmatmul.mubr.bf16.gmra.mrb[0].mxu0 %v286
      %v402 = vpop.f32.mrb[0].mxu0
      %v403 = vadd.f32 0.0, %v402
      %v404 = vpop.f32.mrb[0].mxu0
      %v405 = vadd.f32 0.0, %v404
      %v406 = vpop.f32.mrb[0].mxu0
      %v407 = vadd.f32 0.0, %v406
      %v408 = vpop.f32.mrb[0].mxu0
      %v409 = vadd.f32 0.0, %v408
      %410 = vmatprep.mubr.bf16.mxu0 0
      %411 = vmatmul.mubr.bf16.gmra.mrb[0].mxu0 %v289
      %v412 = vpop.f32.mrb[0].mxu0
      %v413 = vadd.f32 0.0, %v412
      %v414 = vpop.f32.mrb[0].mxu0
      %v415 = vadd.f32 0.0, %v414
      %v416 = vpop.f32.mrb[0].mxu0
      %v417 = vadd.f32 0.0, %v416
      %v418 = vpop.f32.mrb[0].mxu0
      %v419 = vadd.f32 0.0, %v418
      %420 = vmatprep.mubr.bf16.mxu0 0
      %421 = vmatmul.mubr.bf16.gmra.mrb[0].mxu0 %v292
      %v422 = vpop.f32.mrb[0].mxu0
      %v423 = vadd.f32 0.0, %v422
      %v424 = vpop.f32.mrb[0].mxu0
      %v425 = vadd.f32 0.0, %v424
      %v426 = vpop.f32.mrb[0].mxu0
      %v427 = vadd.f32 0.0, %v426
      %v428 = vpop.f32.mrb[0].mxu0
      %v429 = vadd.f32 0.0, %v428
      %430 = vmatprep.mubr.bf16.mxu0 0
      %431 = vmatmul.mubr.bf16.gmra.mrb[0].mxu0 %v295
      %v432 = vpop.f32.mrb[0].mxu0
      %v433 = vadd.f32 0.0, %v432
      %v434 = vpop.f32.mrb[0].mxu0
      %v435 = vadd.f32 0.0, %v434
      %v436 = vpop.f32.mrb[0].mxu0
      %v437 = vadd.f32 0.0, %v436
      %v438 = vpop.f32.mrb[0].mxu0
      %v439 = vadd.f32 0.0, %v438
      %440 = vmatprep.mubr.bf16.mxu0 0
      %441 = vmatmul.mubr.bf16.gmra.mrb[0].mxu0 %v298
      %v442 = vpop.f32.mrb[0].mxu0
      %v443 = vadd.f32 0.0, %v442
      %v444 = vpop.f32.mrb[0].mxu0
      %v445 = vadd.f32 0.0, %v444
      %v446 = vpop.f32.mrb[0].mxu0
      %v447 = vadd.f32 0.0, %v446
      %v448 = vpop.f32.mrb[0].mxu0
      %v449 = vadd.f32 0.0, %v448
      %450 = vmatprep.mubr.bf16.mxu0 0
      %451 = vmatmul.mubr.bf16.gmra.mrb[0].mxu0 %v301
      %v452 = vpop.f32.mrb[0].mxu0
      %v453 = vadd.f32 0.0, %v452
      %v454 = vpop.f32.mrb[0].mxu0
      %v455 = vadd.f32 0.0, %v454
      %v456 = vpop.f32.mrb[0].mxu0
      %v457 = vadd.f32 0.0, %v456
      %v458 = vpop.f32.mrb[0].mxu0
      %v459 = vadd.f32 0.0, %v458
      %460 = vmatprep.mubr.bf16.mxu0 0
      %461 = vmatmul.mubr.bf16.gmra.mrb[0].mxu0 %v304
      %v462 = vpop.f32.mrb[0].mxu0
      %v463 = vadd.f32 0.0, %v462
      %v464 = vpop.f32.mrb[0].mxu0
      %v465 = vadd.f32 0.0, %v464
      %v466 = vpop.f32.mrb[0].mxu0
      %v467 = vadd.f32 0.0, %v466
      %v468 = vpop.f32.mrb[0].mxu0
      %v469 = vadd.f32 0.0, %v468
      %470 = vmatprep.mubr.bf16.mxu0 0
      %471 = vmatmul.mubr.bf16.gmra.mrb[0].mxu0 %v307
      %v472 = vpop.f32.mrb[0].mxu0
      %v473 = vadd.f32 0.0, %v472
      %v474 = vpop.f32.mrb[0].mxu0
      %v475 = vadd.f32 0.0, %v474
      %v476 = vpop.f32.mrb[0].mxu0
      %v477 = vadd.f32 0.0, %v476
      %v478 = vpop.f32.mrb[0].mxu0
      %v479 = vadd.f32 0.0, %v478
      %480 = vmatprep.mubr.bf16.mxu0 0
      %481 = vmatmul.mubr.bf16.gmra.mrb[0].mxu0 %v310
      %v482 = vpop.f32.mrb[0].mxu0
      %v483 = vadd.f32 0.0, %v482
      %v484 = vpop.f32.mrb[0].mxu0
      %v485 = vadd.f32 0.0, %v484
      %v486 = vpop.f32.mrb[0].mxu0
      %v487 = vadd.f32 0.0, %v486
      %v488 = vpop.f32.mrb[0].mxu0
      %v489 = vadd.f32 0.0, %v488
      %490 = vmatprep.mubr.bf16.mxu0 0
      %491 = vmatmul.mubr.bf16.gmra.mrb[0].mxu0 %v313
      %v492 = vpop.f32.mrb[0].mxu0
      %v493 = vadd.f32 0.0, %v492
      %v494 = vpop.f32.mrb[0].mxu0
      %v495 = vadd.f32 0.0, %v494
      %v496 = vpop.f32.mrb[0].mxu0
      %v497 = vadd.f32 0.0, %v496
      %v498 = vpop.f32.mrb[0].mxu0
      %v499 = vadd.f32 0.0, %v498
      %500 = vmatprep.mubr.bf16.mxu0 0
      %501 = vmatmul.mubr.bf16.gmra.mrb[0].mxu0 %v316
      %v502 = vpop.f32.mrb[0].mxu0
      %v503 = vadd.f32 0.0, %v502
      %v504 = vpop.f32.mrb[0].mxu0
      %v505 = vadd.f32 0.0, %v504
      %v506 = vpop.f32.mrb[0].mxu0
      %v507 = vadd.f32 0.0, %v506
      %v508 = vpop.f32.mrb[0].mxu0
      %v509 = vadd.f32 0.0, %v508
      %510 = vdwg.mxu0
      %v511 = vmul.f32 %v353, %v353
      %v512 = vmul.f32 %v357, %v357
      %v513 = vmul.f32 %v363, %v363
      %v514 = vmul.f32 %v367, %v367
      %v515 = vmul.f32 %v373, %v373
      %v516 = vmul.f32 %v377, %v377
      %v517 = vmul.f32 %v383, %v383
      %v518 = vmul.f32 %v387, %v387
      %v519 = vmul.f32 %v393, %v393
      %v520 = vmul.f32 %v397, %v397
      %v521 = vmul.f32 %v403, %v403
      %v522 = vmul.f32 %v407, %v407
      %v523 = vmul.f32 %v413, %v413
      %v524 = vmul.f32 %v417, %v417
      %v525 = vmul.f32 %v423, %v423
      %v526 = vmul.f32 %v427, %v427
      %v527 = vmul.f32 %v433, %v433
      %v528 = vmul.f32 %v437, %v437
      %v529 = vmul.f32 %v443, %v443
      %v530 = vmul.f32 %v447, %v447
      %v531 = vmul.f32 %v453, %v453
      %v532 = vmul.f32 %v457, %v457
      %v533 = vmul.f32 %v463, %v463
      %v534 = vmul.f32 %v467, %v467
      %v535 = vmul.f32 %v473, %v473
      %v536 = vmul.f32 %v477, %v477
      %v537 = vmul.f32 %v483, %v483
      %v538 = vmul.f32 %v487, %v487
      %v539 = vmul.f32 %v493, %v493
      %v540 = vmul.f32 %v497, %v497
      %v541 = vmul.f32 %v503, %v503
      %v542 = vmul.f32 %v507, %v507
      %543 = vadd.xlane.f32.xlu0 %v511
      %v544 = vpop.xlane.xlu0 %543
      %545 = vadd.xlane.f32.xlu0 %v512
      %v546 = vpop.xlane.xlu0 %545
      %547 = vadd.xlane.f32.xlu0 %v513
      %v548 = vpop.xlane.xlu0 %547
      %549 = vadd.xlane.f32.xlu0 %v514
      %v550 = vpop.xlane.xlu0 %549
      %551 = vadd.xlane.f32.xlu0 %v515
      %v552 = vpop.xlane.xlu0 %551
      %553 = vadd.xlane.f32.xlu0 %v516
      %v554 = vpop.xlane.xlu0 %553
      %555 = vadd.xlane.f32.xlu0 %v517
      %v556 = vpop.xlane.xlu0 %555
      %557 = vadd.xlane.f32.xlu0 %v518
      %v558 = vpop.xlane.xlu0 %557
      %559 = vadd.xlane.f32.xlu0 %v519
      %v560 = vpop.xlane.xlu0 %559
      %561 = vadd.xlane.f32.xlu0 %v520
      %v562 = vpop.xlane.xlu0 %561
      %563 = vadd.xlane.f32.xlu0 %v521
      %v564 = vpop.xlane.xlu0 %563
      %565 = vadd.xlane.f32.xlu0 %v522
      %v566 = vpop.xlane.xlu0 %565
      %567 = vadd.xlane.f32.xlu0 %v523
      %v568 = vpop.xlane.xlu0 %567
      %569 = vadd.xlane.f32.xlu0 %v524
      %v570 = vpop.xlane.xlu0 %569
      %571 = vadd.xlane.f32.xlu0 %v525
      %v572 = vpop.xlane.xlu0 %571
      %573 = vadd.xlane.f32.xlu0 %v526
      %v574 = vpop.xlane.xlu0 %573
      %575 = vadd.xlane.f32.xlu0 %v527
      %v576 = vpop.xlane.xlu0 %575
      %577 = vadd.xlane.f32.xlu0 %v528
      %v578 = vpop.xlane.xlu0 %577
      %579 = vadd.xlane.f32.xlu0 %v529
      %v580 = vpop.xlane.xlu0 %579
      %581 = vadd.xlane.f32.xlu0 %v530
      %v582 = vpop.xlane.xlu0 %581
      %583 = vadd.xlane.f32.xlu0 %v531
      %v584 = vpop.xlane.xlu0 %583
      %585 = vadd.xlane.f32.xlu0 %v532
      %v586 = vpop.xlane.xlu0 %585
      %587 = vadd.xlane.f32.xlu0 %v533
      %v588 = vpop.xlane.xlu0 %587
      %589 = vadd.xlane.f32.xlu0 %v534
      %v590 = vpop.xlane.xlu0 %589
      %591 = vadd.xlane.f32.xlu0 %v535
      %v592 = vpop.xlane.xlu0 %591
      %593 = vadd.xlane.f32.xlu0 %v536
      %v594 = vpop.xlane.xlu0 %593
      %595 = vadd.xlane.f32.xlu0 %v537
      %v596 = vpop.xlane.xlu0 %595
      %597 = vadd.xlane.f32.xlu0 %v538
      %v598 = vpop.xlane.xlu0 %597
      %599 = vadd.xlane.f32.xlu0 %v539
      %v600 = vpop.xlane.xlu0 %599
      %601 = vadd.xlane.f32.xlu0 %v540
      %v602 = vpop.xlane.xlu0 %601
      %603 = vadd.xlane.f32.xlu0 %v541
      %v604 = vpop.xlane.xlu0 %603
      %605 = vadd.xlane.f32.xlu0 %v542
      %v606 = vpop.xlane.xlu0 %605
      %v607 = vadd.f32 %v544, 1e-05
      %v608 = vadd.f32 %v546, 1e-05
      %v609 = vadd.f32 %v548, 1e-05
      %v610 = vadd.f32 %v550, 1e-05
      %v611 = vadd.f32 %v552, 1e-05
      %v612 = vadd.f32 %v554, 1e-05
      %v613 = vadd.f32 %v556, 1e-05
      %v614 = vadd.f32 %v558, 1e-05
      %v615 = vadd.f32 %v560, 1e-05
      %v616 = vadd.f32 %v562, 1e-05
      %v617 = vadd.f32 %v564, 1e-05
      %v618 = vadd.f32 %v566, 1e-05
      %v619 = vadd.f32 %v568, 1e-05
      %v620 = vadd.f32 %v570, 1e-05
      %v621 = vadd.f32 %v572, 1e-05
      %v622 = vadd.f32 %v574, 1e-05
      %v623 = vadd.f32 %v576, 1e-05
      %v624 = vadd.f32 %v578, 1e-05
      %v625 = vadd.f32 %v580, 1e-05
      %v626 = vadd.f32 %v582, 1e-05
      %v627 = vadd.f32 %v584, 1e-05
      %v628 = vadd.f32 %v586, 1e-05
      %v629 = vadd.f32 %v588, 1e-05
      %v630 = vadd.f32 %v590, 1e-05
      %v631 = vadd.f32 %v592, 1e-05
      %v632 = vadd.f32 %v594, 1e-05
      %v633 = vadd.f32 %v596, 1e-05
      %v634 = vadd.f32 %v598, 1e-05
      %v635 = vadd.f32 %v600, 1e-05
      %v636 = vadd.f32 %v602, 1e-05
      %v637 = vadd.f32 %v604, 1e-05
      %v638 = vadd.f32 %v606, 1e-05
      %v639 = vmul.f32 %v607, 0.0001
      %v640 = vmul.f32 %v608, 0.0001
      %v641 = vmul.f32 %v609, 0.0001
      %v642 = vmul.f32 %v610, 0.0001
      %v643 = vmul.f32 %v611, 0.0001
      %v644 = vmul.f32 %v612, 0.0001
      %v645 = vmul.f32 %v613, 0.0001
      %v646 = vmul.f32 %v614, 0.0001
      %v647 = vmul.f32 %v615, 0.0001
      %v648 = vmul.f32 %v616, 0.0001
      %v649 = vmul.f32 %v617, 0.0001
      %v650 = vmul.f32 %v618, 0.0001
      %v651 = vmul.f32 %v619, 0.0001
      %v652 = vmul.f32 %v620, 0.0001
      %v653 = vmul.f32 %v621, 0.0001
      %v654 = vmul.f32 %v622, 0.0001
      %v655 = vmul.f32 %v623, 0.0001
      %v656 = vmul.f32 %v624, 0.0001
      %v657 = vmul.f32 %v625, 0.0001
      %v658 = vmul.f32 %v626, 0.0001
      %v659 = vmul.f32 %v627, 0.0001
      %v660 = vmul.f32 %v628, 0.0001
      %v661 = vmul.f32 %v629, 0.0001
      %v662 = vmul.f32 %v630, 0.0001
      %v663 = vmul.f32 %v631, 0.0001
      %v664 = vmul.f32 %v632, 0.0001
      %v665 = vmul.f32 %v633, 0.0001
      %v666 = vmul.f32 %v634, 0.0001
      %v667 = vmul.f32 %v635, 0.0001
      %v668 = vmul.f32 %v636, 0.0001
      %v669 = vmul.f32 %v637, 0.0001
      %v670 = vmul.f32 %v638, 0.0001
      %v671 = vrsqrt.pop %v639
      %v672 = vrsqrt.pop %v640
      %v673 = vrsqrt.pop %v641
      %v674 = vrsqrt.pop %v642
      %v675 = vrsqrt.pop %v643
      %v676 = vrsqrt.pop %v644
      %v677 = vrsqrt.pop %v645
      %v678 = vrsqrt.pop %v646
      %v679 = vrsqrt.pop %v647
      %v680 = vrsqrt.pop %v648
      %v681 = vrsqrt.pop %v649
      %v682 = vrsqrt.pop %v650
      %v683 = vrsqrt.pop %v651
      %v684 = vrsqrt.pop %v652
      %v685 = vrsqrt.pop %v653
      %v686 = vrsqrt.pop %v654
      %v687 = vrsqrt.pop %v655
      %v688 = vrsqrt.pop %v656
      %v689 = vrsqrt.pop %v657
      %v690 = vrsqrt.pop %v658
      %v691 = vrsqrt.pop %v659
      %v692 = vrsqrt.pop %v660
      %v693 = vrsqrt.pop %v661
      %v694 = vrsqrt.pop %v662
      %v695 = vrsqrt.pop %v663
      %v696 = vrsqrt.pop %v664
      %v697 = vrsqrt.pop %v665
      %v698 = vrsqrt.pop %v666
      %v699 = vrsqrt.pop %v667
      %v700 = vrsqrt.pop %v668
      %v701 = vrsqrt.pop %v669
      %v702 = vrsqrt.pop %v670
      %v703 = vmul.f32 %v353, %v671
      %v704 = vmul.f32 %v357, %v672
      %v705 = vmul.f32 %v363, %v673
      %v706 = vmul.f32 %v367, %v674
      %v707 = vmul.f32 %v373, %v675
      %v708 = vmul.f32 %v377, %v676
      %v709 = vmul.f32 %v383, %v677
      %v710 = vmul.f32 %v387, %v678
      %v711 = vmul.f32 %v393, %v679
      %v712 = vmul.f32 %v397, %v680
      %v713 = vmul.f32 %v403, %v681
      %v714 = vmul.f32 %v407, %v682
      %v715 = vmul.f32 %v413, %v683
      %v716 = vmul.f32 %v417, %v684
      %v717 = vmul.f32 %v423, %v685
      %v718 = vmul.f32 %v427, %v686
      %v719 = vmul.f32 %v433, %v687
      %v720 = vmul.f32 %v437, %v688
      %v721 = vmul.f32 %v443, %v689
      %v722 = vmul.f32 %v447, %v690
      %v723 = vmul.f32 %v453, %v691
      %v724 = vmul.f32 %v457, %v692
      %v725 = vmul.f32 %v463, %v693
      %v726 = vmul.f32 %v467, %v694
      %v727 = vmul.f32 %v473, %v695
      %v728 = vmul.f32 %v477, %v696
      %v729 = vmul.f32 %v483, %v697
      %v730 = vmul.f32 %v487, %v698
      %v731 = vmul.f32 %v493, %v699
      %v732 = vmul.f32 %v497, %v700
      %v733 = vmul.f32 %v503, %v701
      %v734 = vmul.f32 %v507, %v702
      %v735 = vmul.f32 %v355, %v355
      %v736 = vmul.f32 %v359, %v359
      %v737 = vmul.f32 %v365, %v365
      %v738 = vmul.f32 %v369, %v369
      %v739 = vmul.f32 %v375, %v375
      %v740 = vmul.f32 %v379, %v379
      %v741 = vmul.f32 %v385, %v385
      %v742 = vmul.f32 %v389, %v389
      %v743 = vmul.f32 %v395, %v395
      %v744 = vmul.f32 %v399, %v399
      %v745 = vmul.f32 %v405, %v405
      %v746 = vmul.f32 %v409, %v409
      %v747 = vmul.f32 %v415, %v415
      %v748 = vmul.f32 %v419, %v419
      %v749 = vmul.f32 %v425, %v425
      %v750 = vmul.f32 %v429, %v429
      %v751 = vmul.f32 %v435, %v435
      %v752 = vmul.f32 %v439, %v439
      %v753 = vmul.f32 %v445, %v445
      %v754 = vmul.f32 %v449, %v449
      %v755 = vmul.f32 %v455, %v455
      %v756 = vmul.f32 %v459, %v459
      %v757 = vmul.f32 %v465, %v465
      %v758 = vmul.f32 %v469, %v469
      %v759 = vmul.f32 %v475, %v475
      %v760 = vmul.f32 %v479, %v479
      %v761 = vmul.f32 %v485, %v485
      %v762 = vmul.f32 %v489, %v489
      %v763 = vmul.f32 %v495, %v495
      %v764 = vmul.f32 %v499, %v499
      %v765 = vmul.f32 %v505, %v505
      %v766 = vmul.f32 %v509, %v509
      %767 = vadd.xlane.f32.xlu0 %v735
      %v768 = vpop.xlane.xlu0 %767
      %769 = vadd.xlane.f32.xlu0 %v736
      %v770 = vpop.xlane.xlu0 %769
      %771 = vadd.xlane.f32.xlu0 %v737
      %v772 = vpop.xlane.xlu0 %771
      %773 = vadd.xlane.f32.xlu0 %v738
      %v774 = vpop.xlane.xlu0 %773
      %775 = vadd.xlane.f32.xlu0 %v739
      %v776 = vpop.xlane.xlu0 %775
      %777 = vadd.xlane.f32.xlu0 %v740
      %v778 = vpop.xlane.xlu0 %777
      %779 = vadd.xlane.f32.xlu0 %v741
      %v780 = vpop.xlane.xlu0 %779
      %781 = vadd.xlane.f32.xlu0 %v742
      %v782 = vpop.xlane.xlu0 %781
      %783 = vadd.xlane.f32.xlu0 %v743
      %v784 = vpop.xlane.xlu0 %783
      %785 = vadd.xlane.f32.xlu0 %v744
      %v786 = vpop.xlane.xlu0 %785
      %787 = vadd.xlane.f32.xlu0 %v745
      %v788 = vpop.xlane.xlu0 %787
      %789 = vadd.xlane.f32.xlu0 %v746
      %v790 = vpop.xlane.xlu0 %789
      %791 = vadd.xlane.f32.xlu0 %v747
      %v792 = vpop.xlane.xlu0 %791
      %793 = vadd.xlane.f32.xlu0 %v748
      %v794 = vpop.xlane.xlu0 %793
      %795 = vadd.xlane.f32.xlu0 %v749
      %v796 = vpop.xlane.xlu0 %795
      %797 = vadd.xlane.f32.xlu0 %v750
      %v798 = vpop.xlane.xlu0 %797
      %799 = vadd.xlane.f32.xlu0 %v751
      %v800 = vpop.xlane.xlu0 %799
      %801 = vadd.xlane.f32.xlu0 %v752
      %v802 = vpop.xlane.xlu0 %801
      %803 = vadd.xlane.f32.xlu0 %v753
      %v804 = vpop.xlane.xlu0 %803
      %805 = vadd.xlane.f32.xlu0 %v754
      %v806 = vpop.xlane.xlu0 %805
      %807 = vadd.xlane.f32.xlu0 %v755
      %v808 = vpop.xlane.xlu0 %807
      %809 = vadd.xlane.f32.xlu0 %v756
      %v810 = vpop.xlane.xlu0 %809
      %811 = vadd.xlane.f32.xlu0 %v757
      %v812 = vpop.xlane.xlu0 %811
      %813 = vadd.xlane.f32.xlu0 %v758
      %v814 = vpop.xlane.xlu0 %813
      %815 = vadd.xlane.f32.xlu0 %v759
      %v816 = vpop.xlane.xlu0 %815
      %817 = vadd.xlane.f32.xlu0 %v760
      %v818 = vpop.xlane.xlu0 %817
      %819 = vadd.xlane.f32.xlu0 %v761
      %v820 = vpop.xlane.xlu0 %819
      %821 = vadd.xlane.f32.xlu0 %v762
      %v822 = vpop.xlane.xlu0 %821
      %823 = vadd.xlane.f32.xlu0 %v763
      %v824 = vpop.xlane.xlu0 %823
      %825 = vadd.xlane.f32.xlu0 %v764
      %v826 = vpop.xlane.xlu0 %825
      %827 = vadd.xlane.f32.xlu0 %v765
      %v828 = vpop.xlane.xlu0 %827
      %829 = vadd.xlane.f32.xlu0 %v766
      %v830 = vpop.xlane.xlu0 %829
      %v831 = vadd.f32 %v768, 1e-05
      %v832 = vadd.f32 %v770, 1e-05
      %v833 = vadd.f32 %v772, 1e-05
      %v834 = vadd.f32 %v774, 1e-05
      %v835 = vadd.f32 %v776, 1e-05
      %v836 = vadd.f32 %v778, 1e-05
      %v837 = vadd.f32 %v780, 1e-05
      %v838 = vadd.f32 %v782, 1e-05
      %v839 = vadd.f32 %v784, 1e-05
      %v840 = vadd.f32 %v786, 1e-05
      %v841 = vadd.f32 %v788, 1e-05
      %v842 = vadd.f32 %v790, 1e-05
      %v843 = vadd.f32 %v792, 1e-05
      %v844 = vadd.f32 %v794, 1e-05
      %v845 = vadd.f32 %v796, 1e-05
      %v846 = vadd.f32 %v798, 1e-05
      %v847 = vadd.f32 %v800, 1e-05
      %v848 = vadd.f32 %v802, 1e-05
      %v849 = vadd.f32 %v804, 1e-05
      %v850 = vadd.f32 %v806, 1e-05
      %v851 = vadd.f32 %v808, 1e-05
      %v852 = vadd.f32 %v810, 1e-05
      %v853 = vadd.f32 %v812, 1e-05
      %v854 = vadd.f32 %v814, 1e-05
      %v855 = vadd.f32 %v816, 1e-05
      %v856 = vadd.f32 %v818, 1e-05
      %v857 = vadd.f32 %v820, 1e-05
      %v858 = vadd.f32 %v822, 1e-05
      %v859 = vadd.f32 %v824, 1e-05
      %v860 = vadd.f32 %v826, 1e-05
      %v861 = vadd.f32 %v828, 1e-05
      %v862 = vadd.f32 %v830, 1e-05
      %v863 = vrsqrt.pop %v831
      %v864 = vrsqrt.pop %v832
      %v865 = vrsqrt.pop %v833
      %v866 = vrsqrt.pop %v834
      %v867 = vrsqrt.pop %v835
      %v868 = vrsqrt.pop %v836
      %v869 = vrsqrt.pop %v837
      %v870 = vrsqrt.pop %v838
      %v871 = vrsqrt.pop %v839
      %v872 = vrsqrt.pop %v840
      %v873 = vrsqrt.pop %v841
      %v874 = vrsqrt.pop %v842
      %v875 = vrsqrt.pop %v843
      %v876 = vrsqrt.pop %v844
      %v877 = vrsqrt.pop %v845
      %v878 = vrsqrt.pop %v846
      %v879 = vrsqrt.pop %v847
      %v880 = vrsqrt.pop %v848
      %v881 = vrsqrt.pop %v849
      %v882 = vrsqrt.pop %v850
      %v883 = vrsqrt.pop %v851
      %v884 = vrsqrt.pop %v852
      %v885 = vrsqrt.pop %v853
      %v886 = vrsqrt.pop %v854
      %v887 = vrsqrt.pop %v855
      %v888 = vrsqrt.pop %v856
      %v889 = vrsqrt.pop %v857
      %v890 = vrsqrt.pop %v858
      %v891 = vrsqrt.pop %v859
      %v892 = vrsqrt.pop %v860
      %v893 = vrsqrt.pop %v861
      %v894 = vrsqrt.pop %v862
      %v895 = vmul.f32 %v355, %v863
      %v896 = vmul.f32 %v359, %v864
      %v897 = vmul.f32 %v365, %v865
      %v898 = vmul.f32 %v369, %v866
      %v899 = vmul.f32 %v375, %v867
      %v900 = vmul.f32 %v379, %v868
      %v901 = vmul.f32 %v385, %v869
      %v902 = vmul.f32 %v389, %v870
      %v903 = vmul.f32 %v395, %v871
      %v904 = vmul.f32 %v399, %v872
      %v905 = vmul.f32 %v405, %v873
      %v906 = vmul.f32 %v409, %v874
      %v907 = vmul.f32 %v415, %v875
      %v908 = vmul.f32 %v419, %v876
      %v909 = vmul.f32 %v425, %v877
      %v910 = vmul.f32 %v429, %v878
      %v911 = vmul.f32 %v435, %v879
      %v912 = vmul.f32 %v439, %v880
      %v913 = vmul.f32 %v445, %v881
      %v914 = vmul.f32 %v449, %v882
      %v915 = vmul.f32 %v455, %v883
      %v916 = vmul.f32 %v459, %v884
      %v917 = vmul.f32 %v465, %v885
      %v918 = vmul.f32 %v469, %v886
      %v919 = vmul.f32 %v475, %v887
      %v920 = vmul.f32 %v479, %v888
      %v921 = vmul.f32 %v485, %v889
      %v922 = vmul.f32 %v489, %v890
      %v923 = vmul.f32 %v495, %v891
      %v924 = vmul.f32 %v499, %v892
      %v925 = vmul.f32 %v505, %v893
      %v926 = vmul.f32 %v509, %v894
      %v927 = vpack.c.bf16 %v704, %v703
      %v928 = vpack.c.bf16 %v706, %v705
      %v929 = vpack.c.bf16 %v708, %v707
      %v930 = vpack.c.bf16 %v710, %v709
      %v931 = vpack.c.bf16 %v712, %v711
      %v932 = vpack.c.bf16 %v714, %v713
      %v933 = vpack.c.bf16 %v716, %v715
      %v934 = vpack.c.bf16 %v718, %v717
      %v935 = vpack.c.bf16 %v720, %v719
      %v936 = vpack.c.bf16 %v722, %v721
      %v937 = vpack.c.bf16 %v724, %v723
      %v938 = vpack.c.bf16 %v726, %v725
      %v939 = vpack.c.bf16 %v728, %v727
      %v940 = vpack.c.bf16 %v730, %v729
      %v941 = vpack.c.bf16 %v732, %v731
      %v942 = vpack.c.bf16 %v734, %v733
      %v943 = vpack.c.bf16 %v896, %v895
      %v944 = vpack.c.bf16 %v898, %v897
      %v945 = vpack.c.bf16 %v900, %v899
      %v946 = vpack.c.bf16 %v902, %v901
      %v947 = vpack.c.bf16 %v904, %v903
      %v948 = vpack.c.bf16 %v906, %v905
      %v949 = vpack.c.bf16 %v908, %v907
      %v950 = vpack.c.bf16 %v910, %v909
      %v951 = vpack.c.bf16 %v912, %v911
      %v952 = vpack.c.bf16 %v914, %v913
      %v953 = vpack.c.bf16 %v916, %v915
      %v954 = vpack.c.bf16 %v918, %v917
      %v955 = vpack.c.bf16 %v920, %v919
      %v956 = vpack.c.bf16 %v922, %v921
      %v957 = vpack.c.bf16 %v924, %v923
      %v958 = vpack.c.bf16 %v926, %v925
      %959 = vmatprep.subr.bf16.mxu0 0
      %960 = vmatpush1.bf16.xpose.msra.mxu0 %v943
      %961 = vmatprep.subr.bf16.mxu0 0
      %962 = vmatpush1.bf16.xpose.msra.mxu0 %v944
      %963 = vmatprep.subr.bf16.mxu0 0
      %964 = vmatpush1.bf16.xpose.msra.mxu0 %v945
      %965 = vmatprep.subr.bf16.mxu0 0
      %966 = vmatpush1.bf16.xpose.msra.mxu0 %v946
      %967 = vmatprep.subr.bf16.mxu0 0
      %968 = vmatpush1.bf16.xpose.msra.mxu0 %v947
      %969 = vmatprep.subr.bf16.mxu0 0
      %970 = vmatpush1.bf16.xpose.msra.mxu0 %v948
      %971 = vmatprep.subr.bf16.mxu0 0
      %972 = vmatpush1.bf16.xpose.msra.mxu0 %v949
      %973 = vmatprep.subr.bf16.mxu0 0
      %974 = vmatpush1.bf16.xpose.msra.mxu0 %v950
      %975 = vmatprep.subr.bf16.mxu0 0
      %976 = vmatpush1.bf16.xpose.msra.mxu0 %v951
      %977 = vmatprep.subr.bf16.mxu0 0
      %978 = vmatpush1.bf16.xpose.msra.mxu0 %v952
      %979 = vmatprep.subr.bf16.mxu0 0
      %980 = vmatpush1.bf16.xpose.msra.mxu0 %v953
      %981 = vmatprep.subr.bf16.mxu0 0
      %982 = vmatpush1.bf16.xpose.msra.mxu0 %v954
      %983 = vmatprep.subr.bf16.mxu0 0
      %984 = vmatpush1.bf16.xpose.msra.mxu0 %v955
      %985 = vmatprep.subr.bf16.mxu0 0
      %986 = vmatpush1.bf16.xpose.msra.mxu0 %v956
      %987 = vmatprep.subr.bf16.mxu0 0
      %988 = vmatpush1.bf16.xpose.msra.mxu0 %v957
      %989 = vmatprep.subr.bf16.mxu0 0
      %990 = vmatpush1.bf16.xpose.msra.mxu0 %v958
      %991 = vmatprep.mubr.bf16.mxu0 0
      %992 = vmatmul.mubr.bf16.gmra.mrb[0].mxu0 %v927
      %v993 = vpop.f32.mrb[0].mxu0
      %v994 = vadd.f32 0.0, %v993
      %v995 = vpop.f32.mrb[0].mxu0
      %v996 = vadd.f32 0.0, %v995
      %v997 = vpop.f32.mrb[0].mxu0
      %v998 = vadd.f32 0.0, %v997
      %v999 = vpop.f32.mrb[0].mxu0
      %v1000 = vadd.f32 0.0, %v999
      %1001 = vmatprep.mubr.bf16.mxu0 0
      %1002 = vmatmul.mubr.bf16.gmra.mrb[0].mxu0 %v928
      %v1003 = vpop.f32.mrb[0].mxu0
      %v1004 = vadd.f32 0.0, %v1003
      %v1005 = vpop.f32.mrb[0].mxu0
      %v1006 = vadd.f32 0.0, %v1005
      %v1007 = vpop.f32.mrb[0].mxu0
      %v1008 = vadd.f32 0.0, %v1007
      %v1009 = vpop.f32.mrb[0].mxu0
      %v1010 = vadd.f32 0.0, %v1009
      %1011 = vmatprep.mubr.bf16.mxu0 0
      %1012 = vmatmul.mubr.bf16.gmra.mrb[0].mxu0 %v929
      %v1013 = vpop.f32.mrb[0].mxu0
      %v1014 = vadd.f32 0.0, %v1013
      %v1015 = vpop.f32.mrb[0].mxu0
      %v1016 = vadd.f32 0.0, %v1015
      %v1017 = vpop.f32.mrb[0].mxu0
      %v1018 = vadd.f32 0.0, %v1017
      %v1019 = vpop.f32.mrb[0].mxu0
      %v1020 = vadd.f32 0.0, %v1019
      %1021 = vmatprep.mubr.bf16.mxu0 0
      %1022 = vmatmul.mubr.bf16.gmra.mrb[0].mxu0 %v930
      %v1023 = vpop.f32.mrb[0].mxu0
      %v1024 = vadd.f32 0.0, %v1023
      %v1025 = vpop.f32.mrb[0].mxu0
      %v1026 = vadd.f32 0.0, %v1025
      %v1027 = vpop.f32.mrb[0].mxu0
      %v1028 = vadd.f32 0.0, %v1027
      %v1029 = vpop.f32.mrb[0].mxu0
      %v1030 = vadd.f32 0.0, %v1029
      %1031 = vmatprep.mubr.bf16.mxu0 0
      %1032 = vmatmul.mubr.bf16.gmra.mrb[0].mxu0 %v931
      %v1033 = vpop.f32.mrb[0].mxu0
      %v1034 = vadd.f32 0.0, %v1033
      %v1035 = vpop.f32.mrb[0].mxu0
      %v1036 = vadd.f32 0.0, %v1035
      %v1037 = vpop.f32.mrb[0].mxu0
      %v1038 = vadd.f32 0.0, %v1037
      %v1039 = vpop.f32.mrb[0].mxu0
      %v1040 = vadd.f32 0.0, %v1039
      %1041 = vmatprep.mubr.bf16.mxu0 0
      %1042 = vmatmul.mubr.bf16.gmra.mrb[0].mxu0 %v932
      %v1043 = vpop.f32.mrb[0].mxu0
      %v1044 = vadd.f32 0.0, %v1043
      %v1045 = vpop.f32.mrb[0].mxu0
      %v1046 = vadd.f32 0.0, %v1045
      %v1047 = vpop.f32.mrb[0].mxu0
      %v1048 = vadd.f32 0.0, %v1047
      %v1049 = vpop.f32.mrb[0].mxu0
      %v1050 = vadd.f32 0.0, %v1049
      %1051 = vmatprep.mubr.bf16.mxu0 0
      %1052 = vmatmul.mubr.bf16.gmra.mrb[0].mxu0 %v933
      %v1053 = vpop.f32.mrb[0].mxu0
      %v1054 = vadd.f32 0.0, %v1053
      %v1055 = vpop.f32.mrb[0].mxu0
      %v1056 = vadd.f32 0.0, %v1055
      %v1057 = vpop.f32.mrb[0].mxu0
      %v1058 = vadd.f32 0.0, %v1057
      %v1059 = vpop.f32.mrb[0].mxu0
      %v1060 = vadd.f32 0.0, %v1059
      %1061 = vmatprep.mubr.bf16.mxu0 0
      %1062 = vmatmul.mubr.bf16.gmra.mrb[0].mxu0 %v934
      %v1063 = vpop.f32.mrb[0].mxu0
      %v1064 = vadd.f32 0.0, %v1063
      %v1065 = vpop.f32.mrb[0].mxu0
      %v1066 = vadd.f32 0.0, %v1065
      %v1067 = vpop.f32.mrb[0].mxu0
      %v1068 = vadd.f32 0.0, %v1067
      %v1069 = vpop.f32.mrb[0].mxu0
      %v1070 = vadd.f32 0.0, %v1069
      %1071 = vmatprep.mubr.bf16.mxu0 0
      %1072 = vmatmul.mubr.bf16.gmra.mrb[0].mxu0 %v935
      %v1073 = vpop.f32.mrb[0].mxu0
      %v1074 = vadd.f32 0.0, %v1073
      %v1075 = vpop.f32.mrb[0].mxu0
      %v1076 = vadd.f32 0.0, %v1075
      %v1077 = vpop.f32.mrb[0].mxu0
      %v1078 = vadd.f32 0.0, %v1077
      %v1079 = vpop.f32.mrb[0].mxu0
      %v1080 = vadd.f32 0.0, %v1079
      %1081 = vmatprep.mubr.bf16.mxu0 0
      %1082 = vmatmul.mubr.bf16.gmra.mrb[0].mxu0 %v936
      %v1083 = vpop.f32.mrb[0].mxu0
      %v1084 = vadd.f32 0.0, %v1083
      %v1085 = vpop.f32.mrb[0].mxu0
      %v1086 = vadd.f32 0.0, %v1085
      %v1087 = vpop.f32.mrb[0].mxu0
      %v1088 = vadd.f32 0.0, %v1087
      %v1089 = vpop.f32.mrb[0].mxu0
      %v1090 = vadd.f32 0.0, %v1089
      %1091 = vmatprep.mubr.bf16.mxu0 0
      %1092 = vmatmul.mubr.bf16.gmra.mrb[0].mxu0 %v937
      %v1093 = vpop.f32.mrb[0].mxu0
      %v1094 = vadd.f32 0.0, %v1093
      %v1095 = vpop.f32.mrb[0].mxu0
      %v1096 = vadd.f32 0.0, %v1095
      %v1097 = vpop.f32.mrb[0].mxu0
      %v1098 = vadd.f32 0.0, %v1097
      %v1099 = vpop.f32.mrb[0].mxu0
      %v1100 = vadd.f32 0.0, %v1099
      %1101 = vmatprep.mubr.bf16.mxu0 0
      %1102 = vmatmul.mubr.bf16.gmra.mrb[0].mxu0 %v938
      %v1103 = vpop.f32.mrb[0].mxu0
      %v1104 = vadd.f32 0.0, %v1103
      %v1105 = vpop.f32.mrb[0].mxu0
      %v1106 = vadd.f32 0.0, %v1105
      %v1107 = vpop.f32.mrb[0].mxu0
      %v1108 = vadd.f32 0.0, %v1107
      %v1109 = vpop.f32.mrb[0].mxu0
      %v1110 = vadd.f32 0.0, %v1109
      %1111 = vmatprep.mubr.bf16.mxu0 0
      %1112 = vmatmul.mubr.bf16.gmra.mrb[0].mxu0 %v939
      %v1113 = vpop.f32.mrb[0].mxu0
      %v1114 = vadd.f32 0.0, %v1113
      %v1115 = vpop.f32.mrb[0].mxu0
      %v1116 = vadd.f32 0.0, %v1115
      %v1117 = vpop.f32.mrb[0].mxu0
      %v1118 = vadd.f32 0.0, %v1117
      %v1119 = vpop.f32.mrb[0].mxu0
      %v1120 = vadd.f32 0.0, %v1119
      %1121 = vmatprep.mubr.bf16.mxu0 0
      %1122 = vmatmul.mubr.bf16.gmra.mrb[0].mxu0 %v940
      %v1123 = vpop.f32.mrb[0].mxu0
      %v1124 = vadd.f32 0.0, %v1123
      %v1125 = vpop.f32.mrb[0].mxu0
      %v1126 = vadd.f32 0.0, %v1125
      %v1127 = vpop.f32.mrb[0].mxu0
      %v1128 = vadd.f32 0.0, %v1127
      %v1129 = vpop.f32.mrb[0].mxu0
      %v1130 = vadd.f32 0.0, %v1129
      %1131 = vmatprep.mubr.bf16.mxu0 0
      %1132 = vmatmul.mubr.bf16.gmra.mrb[0].mxu0 %v941
      %v1133 = vpop.f32.mrb[0].mxu0
      %v1134 = vadd.f32 0.0, %v1133
      %v1135 = vpop.f32.mrb[0].mxu0
      %v1136 = vadd.f32 0.0, %v1135
      %v1137 = vpop.f32.mrb[0].mxu0
      %v1138 = vadd.f32 0.0, %v1137
      %v1139 = vpop.f32.mrb[0].mxu0
      %v1140 = vadd.f32 0.0, %v1139
      %1141 = vmatprep.mubr.bf16.mxu0 0
      %1142 = vmatmul.mubr.bf16.gmra.mrb[0].mxu0 %v942
      %v1143 = vpop.f32.mrb[0].mxu0
      %v1144 = vadd.f32 0.0, %v1143
      %v1145 = vpop.f32.mrb[0].mxu0
      %v1146 = vadd.f32 0.0, %v1145
      %v1147 = vpop.f32.mrb[0].mxu0
      %v1148 = vadd.f32 0.0, %v1147
      %v1149 = vpop.f32.mrb[0].mxu0
      %v1150 = vadd.f32 0.0, %v1149
      %1151 = vdwg.mxu0
      %v1152 = vmax.f32 %v994, %v996
      %1153 = vmax.xlane.f32.xlu0 %v1152
      %v1154 = vpop.xlane.xlu0 %1153
      %v1155 = vmax.f32 %v998, %v1000
      %1156 = vmax.xlane.f32.xlu0 %v1155
      %v1157 = vpop.xlane.xlu0 %1156
      %v1158 = vmax.f32 %v1004, %v1006
      %1159 = vmax.xlane.f32.xlu0 %v1158
      %v1160 = vpop.xlane.xlu0 %1159
      %v1161 = vmax.f32 %v1008, %v1010
      %1162 = vmax.xlane.f32.xlu0 %v1161
      %v1163 = vpop.xlane.xlu0 %1162
      %v1164 = vmax.f32 %v1014, %v1016
      %1165 = vmax.xlane.f32.xlu0 %v1164
      %v1166 = vpop.xlane.xlu0 %1165
      %v1167 = vmax.f32 %v1018, %v1020
      %1168 = vmax.xlane.f32.xlu0 %v1167
      %v1169 = vpop.xlane.xlu0 %1168
      %v1170 = vmax.f32 %v1024, %v1026
      %1171 = vmax.xlane.f32.xlu0 %v1170
      %v1172 = vpop.xlane.xlu0 %1171
      %v1173 = vmax.f32 %v1028, %v1030
      %1174 = vmax.xlane.f32.xlu0 %v1173
      %v1175 = vpop.xlane.xlu0 %1174
      %v1176 = vmax.f32 %v1034, %v1036
      %1177 = vmax.xlane.f32.xlu0 %v1176
      %v1178 = vpop.xlane.xlu0 %1177
      %v1179 = vmax.f32 %v1038, %v1040
      %1180 = vmax.xlane.f32.xlu0 %v1179
      %v1181 = vpop.xlane.xlu0 %1180
      %v1182 = vmax.f32 %v1044, %v1046
      %1183 = vmax.xlane.f32.xlu0 %v1182
      %v1184 = vpop.xlane.xlu0 %1183
      %v1185 = vmax.f32 %v1048, %v1050
      %1186 = vmax.xlane.f32.xlu0 %v1185
      %v1187 = vpop.xlane.xlu0 %1186
      %v1188 = vmax.f32 %v1054, %v1056
      %1189 = vmax.xlane.f32.xlu0 %v1188
      %v1190 = vpop.xlane.xlu0 %1189
      %v1191 = vmax.f32 %v1058, %v1060
      %1192 = vmax.xlane.f32.xlu0 %v1191
      %v1193 = vpop.xlane.xlu0 %1192
      %v1194 = vmax.f32 %v1064, %v1066
      %1195 = vmax.xlane.f32.xlu0 %v1194
      %v1196 = vpop.xlane.xlu0 %1195
      %v1197 = vmax.f32 %v1068, %v1070
      %1198 = vmax.xlane.f32.xlu0 %v1197
      %v1199 = vpop.xlane.xlu0 %1198
      %v1200 = vmax.f32 %v1074, %v1076
      %1201 = vmax.xlane.f32.xlu0 %v1200
      %v1202 = vpop.xlane.xlu0 %1201
      %v1203 = vmax.f32 %v1078, %v1080
      %1204 = vmax.xlane.f32.xlu0 %v1203
      %v1205 = vpop.xlane.xlu0 %1204
      %v1206 = vmax.f32 %v1084, %v1086
      %1207 = vmax.xlane.f32.xlu0 %v1206
      %v1208 = vpop.xlane.xlu0 %1207
      %v1209 = vmax.f32 %v1088, %v1090
      %1210 = vmax.xlane.f32.xlu0 %v1209
      %v1211 = vpop.xlane.xlu0 %1210
      %v1212 = vmax.f32 %v1094, %v1096
      %1213 = vmax.xlane.f32.xlu0 %v1212
      %v1214 = vpop.xlane.xlu0 %1213
      %v1215 = vmax.f32 %v1098, %v1100
      %1216 = vmax.xlane.f32.xlu0 %v1215
      %v1217 = vpop.xlane.xlu0 %1216
      %v1218 = vmax.f32 %v1104, %v1106
      %1219 = vmax.xlane.f32.xlu0 %v1218
      %v1220 = vpop.xlane.xlu0 %1219
      %v1221 = vmax.f32 %v1108, %v1110
      %1222 = vmax.xlane.f32.xlu0 %v1221
      %v1223 = vpop.xlane.xlu0 %1222
      %v1224 = vmax.f32 %v1114, %v1116
      %1225 = vmax.xlane.f32.xlu0 %v1224
      %v1226 = vpop.xlane.xlu0 %1225
      %v1227 = vmax.f32 %v1118, %v1120
      %1228 = vmax.xlane.f32.xlu0 %v1227
      %v1229 = vpop.xlane.xlu0 %1228
      %v1230 = vmax.f32 %v1124, %v1126
      %1231 = vmax.xlane.f32.xlu0 %v1230
      %v1232 = vpop.xlane.xlu0 %1231
      %v1233 = vmax.f32 %v1128, %v1130
      %1234 = vmax.xlane.f32.xlu0 %v1233
      %v1235 = vpop.xlane.xlu0 %1234
      %v1236 = vmax.f32 %v1134, %v1136
      %1237 = vmax.xlane.f32.xlu0 %v1236
      %v1238 = vpop.xlane.xlu0 %1237
      %v1239 = vmax.f32 %v1138, %v1140
      %1240 = vmax.xlane.f32.xlu0 %v1239
      %v1241 = vpop.xlane.xlu0 %1240
      %v1242 = vmax.f32 %v1144, %v1146
      %1243 = vmax.xlane.f32.xlu0 %v1242
      %v1244 = vpop.xlane.xlu0 %1243
      %v1245 = vmax.f32 %v1148, %v1150
      %1246 = vmax.xlane.f32.xlu0 %v1245
      %v1247 = vpop.xlane.xlu0 %1246
      %v1248 = vsub.f32 %v994, %v1154
      %v1249 = vsub.f32 %v996, %v1154
      %v1250 = vsub.f32 %v998, %v1157
      %v1251 = vsub.f32 %v1000, %v1157
      %v1252 = vsub.f32 %v1004, %v1160
      %v1253 = vsub.f32 %v1006, %v1160
      %v1254 = vsub.f32 %v1008, %v1163
      %v1255 = vsub.f32 %v1010, %v1163
      %v1256 = vsub.f32 %v1014, %v1166
      %v1257 = vsub.f32 %v1016, %v1166
      %v1258 = vsub.f32 %v1018, %v1169
      %v1259 = vsub.f32 %v1020, %v1169
      %v1260 = vsub.f32 %v1024, %v1172
      %v1261 = vsub.f32 %v1026, %v1172
      %v1262 = vsub.f32 %v1028, %v1175
      %v1263 = vsub.f32 %v1030, %v1175
      %v1264 = vsub.f32 %v1034, %v1178
      %v1265 = vsub.f32 %v1036, %v1178
      %v1266 = vsub.f32 %v1038, %v1181
      %v1267 = vsub.f32 %v1040, %v1181
      %v1268 = vsub.f32 %v1044, %v1184
      %v1269 = vsub.f32 %v1046, %v1184
      %v1270 = vsub.f32 %v1048, %v1187
      %v1271 = vsub.f32 %v1050, %v1187
      %v1272 = vsub.f32 %v1054, %v1190
      %v1273 = vsub.f32 %v1056, %v1190
      %v1274 = vsub.f32 %v1058, %v1193
      %v1275 = vsub.f32 %v1060, %v1193
      %v1276 = vsub.f32 %v1064, %v1196
      %v1277 = vsub.f32 %v1066, %v1196
      %v1278 = vsub.f32 %v1068, %v1199
      %v1279 = vsub.f32 %v1070, %v1199
      %v1280 = vsub.f32 %v1074, %v1202
      %v1281 = vsub.f32 %v1076, %v1202
      %v1282 = vsub.f32 %v1078, %v1205
      %v1283 = vsub.f32 %v1080, %v1205
      %v1284 = vsub.f32 %v1084, %v1208
      %v1285 = vsub.f32 %v1086, %v1208
      %v1286 = vsub.f32 %v1088, %v1211
      %v1287 = vsub.f32 %v1090, %v1211
      %v1288 = vsub.f32 %v1094, %v1214
      %v1289 = vsub.f32 %v1096, %v1214
      %v1290 = vsub.f32 %v1098, %v1217
      %v1291 = vsub.f32 %v1100, %v1217
      %v1292 = vsub.f32 %v1104, %v1220
      %v1293 = vsub.f32 %v1106, %v1220
      %v1294 = vsub.f32 %v1108, %v1223
      %v1295 = vsub.f32 %v1110, %v1223
      %v1296 = vsub.f32 %v1114, %v1226
      %v1297 = vsub.f32 %v1116, %v1226
      %v1298 = vsub.f32 %v1118, %v1229
      %v1299 = vsub.f32 %v1120, %v1229
      %v1300 = vsub.f32 %v1124, %v1232
      %v1301 = vsub.f32 %v1126, %v1232
      %v1302 = vsub.f32 %v1128, %v1235
      %v1303 = vsub.f32 %v1130, %v1235
      %v1304 = vsub.f32 %v1134, %v1238
      %v1305 = vsub.f32 %v1136, %v1238
      %v1306 = vsub.f32 %v1138, %v1241
      %v1307 = vsub.f32 %v1140, %v1241
      %v1308 = vsub.f32 %v1144, %v1244
      %v1309 = vsub.f32 %v1146, %v1244
      %v1310 = vsub.f32 %v1148, %v1247
      %v1311 = vsub.f32 %v1150, %v1247
      %v1312 = vmul.f32 %v1248, 1.442695
      %v1313 = vpow.pop %v1312
      %v1314 = vmul.f32 %v1249, 1.442695
      %v1315 = vpow.pop %v1314
      %v1316 = vmul.f32 %v1250, 1.442695
      %v1317 = vpow.pop %v1316
      %v1318 = vmul.f32 %v1251, 1.442695
      %v1319 = vpow.pop %v1318
      %v1320 = vmul.f32 %v1252, 1.442695
      %v1321 = vpow.pop %v1320
      %v1322 = vmul.f32 %v1253, 1.442695
      %v1323 = vpow.pop %v1322
      %v1324 = vmul.f32 %v1254, 1.442695
      %v1325 = vpow.pop %v1324
      %v1326 = vmul.f32 %v1255, 1.442695
      %v1327 = vpow.pop %v1326
      %v1328 = vmul.f32 %v1256, 1.442695
      %v1329 = vpow.pop %v1328
      %v1330 = vmul.f32 %v1257, 1.442695
      %v1331 = vpow.pop %v1330
      %v1332 = vmul.f32 %v1258, 1.442695
      %v1333 = vpow.pop %v1332
      %v1334 = vmul.f32 %v1259, 1.442695
      %v1335 = vpow.pop %v1334
      %v1336 = vmul.f32 %v1260, 1.442695
      %v1337 = vpow.pop %v1336
      %v1338 = vmul.f32 %v1261, 1.442695
      %v1339 = vpow.pop %v1338
      %v1340 = vmul.f32 %v1262, 1.442695
      %v1341 = vpow.pop %v1340
      %v1342 = vmul.f32 %v1263, 1.442695
      %v1343 = vpow.pop %v1342
      %v1344 = vmul.f32 %v1264, 1.442695
      %v1345 = vpow.pop %v1344
      %v1346 = vmul.f32 %v1265, 1.442695
      %v1347 = vpow.pop %v1346
      %v1348 = vmul.f32 %v1266, 1.442695
      %v1349 = vpow.pop %v1348
      %v1350 = vmul.f32 %v1267, 1.442695
      %v1351 = vpow.pop %v1350
      %v1352 = vmul.f32 %v1268, 1.442695
      %v1353 = vpow.pop %v1352
      %v1354 = vmul.f32 %v1269, 1.442695
      %v1355 = vpow.pop %v1354
      %v1356 = vmul.f32 %v1270, 1.442695
      %v1357 = vpow.pop %v1356
      %v1358 = vmul.f32 %v1271, 1.442695
      %v1359 = vpow.pop %v1358
      %v1360 = vmul.f32 %v1272, 1.442695
      %v1361 = vpow.pop %v1360
      %v1362 = vmul.f32 %v1273, 1.442695
      %v1363 = vpow.pop %v1362
      %v1364 = vmul.f32 %v1274, 1.442695
      %v1365 = vpow.pop %v1364
      %v1366 = vmul.f32 %v1275, 1.442695
      %v1367 = vpow.pop %v1366
      %v1368 = vmul.f32 %v1276, 1.442695
      %v1369 = vpow.pop %v1368
      %v1370 = vmul.f32 %v1277, 1.442695
      %v1371 = vpow.pop %v1370
      %v1372 = vmul.f32 %v1278, 1.442695
      %v1373 = vpow.pop %v1372
      %v1374 = vmul.f32 %v1279, 1.442695
      %v1375 = vpow.pop %v1374
      %v1376 = vmul.f32 %v1280, 1.442695
      %v1377 = vpow.pop %v1376
      %v1378 = vmul.f32 %v1281, 1.442695
      %v1379 = vpow.pop %v1378
      %v1380 = vmul.f32 %v1282, 1.442695
      %v1381 = vpow.pop %v1380
      %v1382 = vmul.f32 %v1283, 1.442695
      %v1383 = vpow.pop %v1382
      %v1384 = vmul.f32 %v1284, 1.442695
      %v1385 = vpow.pop %v1384
      %v1386 = vmul.f32 %v1285, 1.442695
      %v1387 = vpow.pop %v1386
      %v1388 = vmul.f32 %v1286, 1.442695
      %v1389 = vpow.pop %v1388
      %v1390 = vmul.f32 %v1287, 1.442695
      %v1391 = vpow.pop %v1390
      %v1392 = vmul.f32 %v1288, 1.442695
      %v1393 = vpow.pop %v1392
      %v1394 = vmul.f32 %v1289, 1.442695
      %v1395 = vpow.pop %v1394
      %v1396 = vmul.f32 %v1290, 1.442695
      %v1397 = vpow.pop %v1396
      %v1398 = vmul.f32 %v1291, 1.442695
      %v1399 = vpow.pop %v1398
      %v1400 = vmul.f32 %v1292, 1.442695
      %v1401 = vpow.pop %v1400
      %v1402 = vmul.f32 %v1293, 1.442695
      %v1403 = vpow.pop %v1402
      %v1404 = vmul.f32 %v1294, 1.442695
      %v1405 = vpow.pop %v1404
      %v1406 = vmul.f32 %v1295, 1.442695
      %v1407 = vpow.pop %v1406
      %v1408 = vmul.f32 %v1296, 1.442695
      %v1409 = vpow.pop %v1408
      %v1410 = vmul.f32 %v1297, 1.442695
      %v1411 = vpow.pop %v1410
      %v1412 = vmul.f32 %v1298, 1.442695
      %v1413 = vpow.pop %v1412
      %v1414 = vmul.f32 %v1299, 1.442695
      %v1415 = vpow.pop %v1414
      %v1416 = vmul.f32 %v1300, 1.442695
      %v1417 = vpow.pop %v1416
      %v1418 = vmul.f32 %v1301, 1.442695
      %v1419 = vpow.pop %v1418
      %v1420 = vmul.f32 %v1302, 1.442695
      %v1421 = vpow.pop %v1420
      %v1422 = vmul.f32 %v1303, 1.442695
      %v1423 = vpow.pop %v1422
      %v1424 = vmul.f32 %v1304, 1.442695
      %v1425 = vpow.pop %v1424
      %v1426 = vmul.f32 %v1305, 1.442695
      %v1427 = vpow.pop %v1426
      %v1428 = vmul.f32 %v1306, 1.442695
      %v1429 = vpow.pop %v1428
      %v1430 = vmul.f32 %v1307, 1.442695
      %v1431 = vpow.pop %v1430
      %v1432 = vmul.f32 %v1308, 1.442695
      %v1433 = vpow.pop %v1432
      %v1434 = vmul.f32 %v1309, 1.442695
      %v1435 = vpow.pop %v1434
      %v1436 = vmul.f32 %v1310, 1.442695
      %v1437 = vpow.pop %v1436
      %v1438 = vmul.f32 %v1311, 1.442695
      %v1439 = vpow.pop %v1438
      %v1440 = vadd.f32 %v1313, %v1315
      %1441 = vadd.xlane.f32.xlu0 %v1440
      %v1442 = vpop.xlane.xlu0 %1441
      %v1443 = vadd.f32 %v1317, %v1319
      %1444 = vadd.xlane.f32.xlu0 %v1443
      %v1445 = vpop.xlane.xlu0 %1444
      %v1446 = vadd.f32 %v1321, %v1323
      %1447 = vadd.xlane.f32.xlu0 %v1446
      %v1448 = vpop.xlane.xlu0 %1447
      %v1449 = vadd.f32 %v1325, %v1327
      %1450 = vadd.xlane.f32.xlu0 %v1449
      %v1451 = vpop.xlane.xlu0 %1450
      %v1452 = vadd.f32 %v1329, %v1331
      %1453 = vadd.xlane.f32.xlu0 %v1452
      %v1454 = vpop.xlane.xlu0 %1453
      %v1455 = vadd.f32 %v1333, %v1335
      %1456 = vadd.xlane.f32.xlu0 %v1455
      %v1457 = vpop.xlane.xlu0 %1456
      %v1458 = vadd.f32 %v1337, %v1339
      %1459 = vadd.xlane.f32.xlu0 %v1458
      %v1460 = vpop.xlane.xlu0 %1459
      %v1461 = vadd.f32 %v1341, %v1343
      %1462 = vadd.xlane.f32.xlu0 %v1461
      %v1463 = vpop.xlane.xlu0 %1462
      %v1464 = vadd.f32 %v1345, %v1347
      %1465 = vadd.xlane.f32.xlu0 %v1464
      %v1466 = vpop.xlane.xlu0 %1465
      %v1467 = vadd.f32 %v1349, %v1351
      %1468 = vadd.xlane.f32.xlu0 %v1467
      %v1469 = vpop.xlane.xlu0 %1468
      %v1470 = vadd.f32 %v1353, %v1355
      %1471 = vadd.xlane.f32.xlu0 %v1470
      %v1472 = vpop.xlane.xlu0 %1471
      %v1473 = vadd.f32 %v1357, %v1359
      %1474 = vadd.xlane.f32.xlu0 %v1473
      %v1475 = vpop.xlane.xlu0 %1474
      %v1476 = vadd.f32 %v1361, %v1363
      %1477 = vadd.xlane.f32.xlu0 %v1476
      %v1478 = vpop.xlane.xlu0 %1477
      %v1479 = vadd.f32 %v1365, %v1367
      %1480 = vadd.xlane.f32.xlu0 %v1479
      %v1481 = vpop.xlane.xlu0 %1480
      %v1482 = vadd.f32 %v1369, %v1371
      %1483 = vadd.xlane.f32.xlu0 %v1482
      %v1484 = vpop.xlane.xlu0 %1483
      %v1485 = vadd.f32 %v1373, %v1375
      %1486 = vadd.xlane.f32.xlu0 %v1485
      %v1487 = vpop.xlane.xlu0 %1486
      %v1488 = vadd.f32 %v1377, %v1379
      %1489 = vadd.xlane.f32.xlu0 %v1488
      %v1490 = vpop.xlane.xlu0 %1489
      %v1491 = vadd.f32 %v1381, %v1383
      %1492 = vadd.xlane.f32.xlu0 %v1491
      %v1493 = vpop.xlane.xlu0 %1492
      %v1494 = vadd.f32 %v1385, %v1387
      %1495 = vadd.xlane.f32.xlu0 %v1494
      %v1496 = vpop.xlane.xlu0 %1495
      %v1497 = vadd.f32 %v1389, %v1391
      %1498 = vadd.xlane.f32.xlu0 %v1497
      %v1499 = vpop.xlane.xlu0 %1498
      %v1500 = vadd.f32 %v1393, %v1395
      %1501 = vadd.xlane.f32.xlu0 %v1500
      %v1502 = vpop.xlane.xlu0 %1501
      %v1503 = vadd.f32 %v1397, %v1399
      %1504 = vadd.xlane.f32.xlu0 %v1503
      %v1505 = vpop.xlane.xlu0 %1504
      %v1506 = vadd.f32 %v1401, %v1403
      %1507 = vadd.xlane.f32.xlu0 %v1506
      %v1508 = vpop.xlane.xlu0 %1507
      %v1509 = vadd.f32 %v1405, %v1407
      %1510 = vadd.xlane.f32.xlu0 %v1509
      %v1511 = vpop.xlane.xlu0 %1510
      %v1512 = vadd.f32 %v1409, %v1411
      %1513 = vadd.xlane.f32.xlu0 %v1512
      %v1514 = vpop.xlane.xlu0 %1513
      %v1515 = vadd.f32 %v1413, %v1415
      %1516 = vadd.xlane.f32.xlu0 %v1515
      %v1517 = vpop.xlane.xlu0 %1516
      %v1518 = vadd.f32 %v1417, %v1419
      %1519 = vadd.xlane.f32.xlu0 %v1518
      %v1520 = vpop.xlane.xlu0 %1519
      %v1521 = vadd.f32 %v1421, %v1423
      %1522 = vadd.xlane.f32.xlu0 %v1521
      %v1523 = vpop.xlane.xlu0 %1522
      %v1524 = vadd.f32 %v1425, %v1427
      %1525 = vadd.xlane.f32.xlu0 %v1524
      %v1526 = vpop.xlane.xlu0 %1525
      %v1527 = vadd.f32 %v1429, %v1431
      %1528 = vadd.xlane.f32.xlu0 %v1527
      %v1529 = vpop.xlane.xlu0 %1528
      %v1530 = vadd.f32 %v1433, %v1435
      %1531 = vadd.xlane.f32.xlu0 %v1530
      %v1532 = vpop.xlane.xlu0 %1531
      %v1533 = vadd.f32 %v1437, %v1439
      %1534 = vadd.xlane.f32.xlu0 %v1533
      %v1535 = vpop.xlane.xlu0 %1534
      %v1536 = vpack.c.bf16 %v1317, %v1313
      %v1537 = vpack.c.bf16 %v1319, %v1315
      %v1538 = vpack.c.bf16 %v1325, %v1321
      %v1539 = vpack.c.bf16 %v1327, %v1323
      %v1540 = vpack.c.bf16 %v1333, %v1329
      %v1541 = vpack.c.bf16 %v1335, %v1331
      %v1542 = vpack.c.bf16 %v1341, %v1337
      %v1543 = vpack.c.bf16 %v1343, %v1339
      %v1544 = vpack.c.bf16 %v1349, %v1345
      %v1545 = vpack.c.bf16 %v1351, %v1347
      %v1546 = vpack.c.bf16 %v1357, %v1353
      %v1547 = vpack.c.bf16 %v1359, %v1355
      %v1548 = vpack.c.bf16 %v1365, %v1361
      %v1549 = vpack.c.bf16 %v1367, %v1363
      %v1550 = vpack.c.bf16 %v1373, %v1369
      %v1551 = vpack.c.bf16 %v1375, %v1371
      %v1552 = vpack.c.bf16 %v1381, %v1377
      %v1553 = vpack.c.bf16 %v1383, %v1379
      %v1554 = vpack.c.bf16 %v1389, %v1385
      %v1555 = vpack.c.bf16 %v1391, %v1387
      %v1556 = vpack.c.bf16 %v1397, %v1393
      %v1557 = vpack.c.bf16 %v1399, %v1395
      %v1558 = vpack.c.bf16 %v1405, %v1401
      %v1559 = vpack.c.bf16 %v1407, %v1403
      %v1560 = vpack.c.bf16 %v1413, %v1409
      %v1561 = vpack.c.bf16 %v1415, %v1411
      %v1562 = vpack.c.bf16 %v1421, %v1417
      %v1563 = vpack.c.bf16 %v1423, %v1419
      %v1564 = vpack.c.bf16 %v1429, %v1425
      %v1565 = vpack.c.bf16 %v1431, %v1427
      %v1566 = vpack.c.bf16 %v1437, %v1433
      %v1567 = vpack.c.bf16 %v1439, %v1435
      %1584 = vmatprep.subr.bf16.mxu0 0
      %1585 = vmatpush1.bf16.msra.mxu0 %v243
      %1586 = vmatprep.subr.bf16.mxu0 0
      %1587 = vmatpush1.bf16.msra.mxu0 %v244
      %1588 = vmatprep.subr.bf16.mxu0 0
      %1589 = vmatpush1.bf16.msra.mxu0 %v245
      %1590 = vmatprep.subr.bf16.mxu0 0
      %1591 = vmatpush1.bf16.msra.mxu0 %v246
      %1592 = vmatprep.subr.bf16.mxu0 0
      %1593 = vmatpush1.bf16.msra.mxu0 %v247
      %1594 = vmatprep.subr.bf16.mxu0 0
      %1595 = vmatpush1.bf16.msra.mxu0 %v248
      %1596 = vmatprep.subr.bf16.mxu0 0
      %1597 = vmatpush1.bf16.msra.mxu0 %v249
      %1598 = vmatprep.subr.bf16.mxu0 0
      %1599 = vmatpush1.bf16.msra.mxu0 %v250
      %1600 = vmatprep.subr.bf16.mxu0 0
      %1601 = vmatpush1.bf16.msra.mxu0 %v251
      %1602 = vmatprep.subr.bf16.mxu0 0
      %1603 = vmatpush1.bf16.msra.mxu0 %v252
      %1604 = vmatprep.subr.bf16.mxu0 0
      %1605 = vmatpush1.bf16.msra.mxu0 %v253
      %1606 = vmatprep.subr.bf16.mxu0 0
      %1607 = vmatpush1.bf16.msra.mxu0 %v254
      %1608 = vmatprep.subr.bf16.mxu0 0
      %1609 = vmatpush1.bf16.msra.mxu0 %v255
      %1610 = vmatprep.subr.bf16.mxu0 0
      %1611 = vmatpush1.bf16.msra.mxu0 %v256
      %1612 = vmatprep.subr.bf16.mxu0 0
      %1613 = vmatpush1.bf16.msra.mxu0 %v257
      %1614 = vmatprep.subr.bf16.mxu0 0
      %1615 = vmatpush1.bf16.msra.mxu0 %v258
      %1616 = vmatprep.mubr.bf16.mxu0 %v1537
      %1617 = vmatmul.mubr.bf16.gmra.mrb[0].mxu0 %v1536
      %v1618 = vpop.f32.mrb[0].mxu0
      %v1619 = vadd.f32 0.0, %v1618
      %v1620 = vpop.f32.mrb[0].mxu0
      %v1621 = vpop.f32.mrb[0].mxu0
      %v1622 = vadd.f32 0.0, %v1621
      %v1623 = vpop.f32.mrb[0].mxu0
      %1624 = vmatprep.mubr.bf16.mxu0 %v1539
      %1625 = vmatmul.mubr.bf16.gmra.mrb[0].mxu0 %v1538
      %v1626 = vpop.f32.mrb[0].mxu0
      %v1627 = vadd.f32 0.0, %v1626
      %v1628 = vpop.f32.mrb[0].mxu0
      %v1629 = vpop.f32.mrb[0].mxu0
      %v1630 = vadd.f32 0.0, %v1629
      %v1631 = vpop.f32.mrb[0].mxu0
      %1632 = vmatprep.mubr.bf16.mxu0 %v1541
      %1633 = vmatmul.mubr.bf16.gmra.mrb[0].mxu0 %v1540
      %v1634 = vpop.f32.mrb[0].mxu0
      %v1635 = vadd.f32 0.0, %v1634
      %v1636 = vpop.f32.mrb[0].mxu0
      %v1637 = vpop.f32.mrb[0].mxu0
      %v1638 = vadd.f32 0.0, %v1637
      %v1639 = vpop.f32.mrb[0].mxu0
      %1640 = vmatprep.mubr.bf16.mxu0 %v1543
      %1641 = vmatmul.mubr.bf16.gmra.mrb[0].mxu0 %v1542
      %v1642 = vpop.f32.mrb[0].mxu0
      %v1643 = vadd.f32 0.0, %v1642
      %v1644 = vpop.f32.mrb[0].mxu0
      %v1645 = vpop.f32.mrb[0].mxu0
      %v1646 = vadd.f32 0.0, %v1645
      %v1647 = vpop.f32.mrb[0].mxu0
      %1648 = vmatprep.mubr.bf16.mxu0 %v1545
      %1649 = vmatmul.mubr.bf16.gmra.mrb[0].mxu0 %v1544
      %v1650 = vpop.f32.mrb[0].mxu0
      %v1651 = vadd.f32 0.0, %v1650
      %v1652 = vpop.f32.mrb[0].mxu0
      %v1653 = vpop.f32.mrb[0].mxu0
      %v1654 = vadd.f32 0.0, %v1653
      %v1655 = vpop.f32.mrb[0].mxu0
      %1656 = vmatprep.mubr.bf16.mxu0 %v1547
      %1657 = vmatmul.mubr.bf16.gmra.mrb[0].mxu0 %v1546
      %v1658 = vpop.f32.mrb[0].mxu0
      %v1659 = vadd.f32 0.0, %v1658
      %v1660 = vpop.f32.mrb[0].mxu0
      %v1661 = vpop.f32.mrb[0].mxu0
      %v1662 = vadd.f32 0.0, %v1661
      %v1663 = vpop.f32.mrb[0].mxu0
      %1664 = vmatprep.mubr.bf16.mxu0 %v1549
      %1665 = vmatmul.mubr.bf16.gmra.mrb[0].mxu0 %v1548
      %v1666 = vpop.f32.mrb[0].mxu0
      %v1667 = vadd.f32 0.0, %v1666
      %v1668 = vpop.f32.mrb[0].mxu0
      %v1669 = vpop.f32.mrb[0].mxu0
      %v1670 = vadd.f32 0.0, %v1669
      %v1671 = vpop.f32.mrb[0].mxu0
      %1672 = vmatprep.mubr.bf16.mxu0 %v1551
      %1673 = vmatmul.mubr.bf16.gmra.mrb[0].mxu0 %v1550
      %v1674 = vpop.f32.mrb[0].mxu0
      %v1675 = vadd.f32 0.0, %v1674
      %v1676 = vpop.f32.mrb[0].mxu0
      %v1677 = vpop.f32.mrb[0].mxu0
      %v1678 = vadd.f32 0.0, %v1677
      %v1679 = vpop.f32.mrb[0].mxu0
      %1680 = vmatprep.mubr.bf16.mxu0 %v1553
      %1681 = vmatmul.mubr.bf16.gmra.mrb[0].mxu0 %v1552
      %v1682 = vpop.f32.mrb[0].mxu0
      %v1683 = vadd.f32 0.0, %v1682
      %v1684 = vpop.f32.mrb[0].mxu0
      %v1685 = vpop.f32.mrb[0].mxu0
      %v1686 = vadd.f32 0.0, %v1685
      %v1687 = vpop.f32.mrb[0].mxu0
      %1688 = vmatprep.mubr.bf16.mxu0 %v1555
      %1689 = vmatmul.mubr.bf16.gmra.mrb[0].mxu0 %v1554
      %v1690 = vpop.f32.mrb[0].mxu0
      %v1691 = vadd.f32 0.0, %v1690
      %v1692 = vpop.f32.mrb[0].mxu0
      %v1693 = vpop.f32.mrb[0].mxu0
      %v1694 = vadd.f32 0.0, %v1693
      %v1695 = vpop.f32.mrb[0].mxu0
      %1696 = vmatprep.mubr.bf16.mxu0 %v1557
      %1697 = vmatmul.mubr.bf16.gmra.mrb[0].mxu0 %v1556
      %v1698 = vpop.f32.mrb[0].mxu0
      %v1699 = vadd.f32 0.0, %v1698
      %v1700 = vpop.f32.mrb[0].mxu0
      %v1701 = vpop.f32.mrb[0].mxu0
      %v1702 = vadd.f32 0.0, %v1701
      %v1703 = vpop.f32.mrb[0].mxu0
      %1704 = vmatprep.mubr.bf16.mxu0 %v1559
      %1705 = vmatmul.mubr.bf16.gmra.mrb[0].mxu0 %v1558
      %v1706 = vpop.f32.mrb[0].mxu0
      %v1707 = vadd.f32 0.0, %v1706
      %v1708 = vpop.f32.mrb[0].mxu0
      %v1709 = vpop.f32.mrb[0].mxu0
      %v1710 = vadd.f32 0.0, %v1709
      %v1711 = vpop.f32.mrb[0].mxu0
      %1712 = vmatprep.mubr.bf16.mxu0 %v1561
      %1713 = vmatmul.mubr.bf16.gmra.mrb[0].mxu0 %v1560
      %v1714 = vpop.f32.mrb[0].mxu0
      %v1715 = vadd.f32 0.0, %v1714
      %v1716 = vpop.f32.mrb[0].mxu0
      %v1717 = vpop.f32.mrb[0].mxu0
      %v1718 = vadd.f32 0.0, %v1717
      %v1719 = vpop.f32.mrb[0].mxu0
      %1720 = vmatprep.mubr.bf16.mxu0 %v1563
      %1721 = vmatmul.mubr.bf16.gmra.mrb[0].mxu0 %v1562
      %v1722 = vpop.f32.mrb[0].mxu0
      %v1723 = vadd.f32 0.0, %v1722
      %v1724 = vpop.f32.mrb[0].mxu0
      %v1725 = vpop.f32.mrb[0].mxu0
      %v1726 = vadd.f32 0.0, %v1725
      %v1727 = vpop.f32.mrb[0].mxu0
      %1728 = vmatprep.mubr.bf16.mxu0 %v1565
      %1729 = vmatmul.mubr.bf16.gmra.mrb[0].mxu0 %v1564
      %v1730 = vpop.f32.mrb[0].mxu0
      %v1731 = vadd.f32 0.0, %v1730
      %v1732 = vpop.f32.mrb[0].mxu0
      %v1733 = vpop.f32.mrb[0].mxu0
      %v1734 = vadd.f32 0.0, %v1733
      %v1735 = vpop.f32.mrb[0].mxu0
      %1736 = vmatprep.mubr.bf16.mxu0 %v1567
      %1737 = vmatmul.mubr.bf16.gmra.mrb[0].mxu0 %v1566
      %v1738 = vpop.f32.mrb[0].mxu0
      %v1739 = vadd.f32 0.0, %v1738
      %v1740 = vpop.f32.mrb[0].mxu0
      %v1741 = vpop.f32.mrb[0].mxu0
      %v1742 = vadd.f32 0.0, %v1741
      %v1743 = vpop.f32.mrb[0].mxu0
      %1744 = vdwg.mxu0
      %v1745 = vrcp.pop %v1442
      %v1746 = vrcp.pop %v1445
      %v1747 = vrcp.pop %v1448
      %v1748 = vrcp.pop %v1451
      %v1749 = vrcp.pop %v1454
      %v1750 = vrcp.pop %v1457
      %v1751 = vrcp.pop %v1460
      %v1752 = vrcp.pop %v1463
      %v1753 = vrcp.pop %v1466
      %v1754 = vrcp.pop %v1469
      %v1755 = vrcp.pop %v1472
      %v1756 = vrcp.pop %v1475
      %v1757 = vrcp.pop %v1478
      %v1758 = vrcp.pop %v1481
      %v1759 = vrcp.pop %v1484
      %v1760 = vrcp.pop %v1487
      %v1761 = vrcp.pop %v1490
      %v1762 = vrcp.pop %v1493
      %v1763 = vrcp.pop %v1496
      %v1764 = vrcp.pop %v1499
      %v1765 = vrcp.pop %v1502
      %v1766 = vrcp.pop %v1505
      %v1767 = vrcp.pop %v1508
      %v1768 = vrcp.pop %v1511
      %v1769 = vrcp.pop %v1514
      %v1770 = vrcp.pop %v1517
      %v1771 = vrcp.pop %v1520
      %v1772 = vrcp.pop %v1523
      %v1773 = vrcp.pop %v1526
      %v1774 = vrcp.pop %v1529
      %v1775 = vrcp.pop %v1532
      %v1776 = vrcp.pop %v1535
      %v1777 = vmul.f32 %v1619, %v1745
      %v1778 = vmul.f32 %v1622, %v1746
      %v1779 = vmul.f32 %v1627, %v1747
      %v1780 = vmul.f32 %v1630, %v1748
      %v1781 = vmul.f32 %v1635, %v1749
      %v1782 = vmul.f32 %v1638, %v1750
      %v1783 = vmul.f32 %v1643, %v1751
      %v1784 = vmul.f32 %v1646, %v1752
      %v1785 = vmul.f32 %v1651, %v1753
      %v1786 = vmul.f32 %v1654, %v1754
      %v1787 = vmul.f32 %v1659, %v1755
      %v1788 = vmul.f32 %v1662, %v1756
      %v1789 = vmul.f32 %v1667, %v1757
      %v1790 = vmul.f32 %v1670, %v1758
      %v1791 = vmul.f32 %v1675, %v1759
      %v1792 = vmul.f32 %v1678, %v1760
      %v1793 = vmul.f32 %v1683, %v1761
      %v1794 = vmul.f32 %v1686, %v1762
      %v1795 = vmul.f32 %v1691, %v1763
      %v1796 = vmul.f32 %v1694, %v1764
      %v1797 = vmul.f32 %v1699, %v1765
      %v1798 = vmul.f32 %v1702, %v1766
      %v1799 = vmul.f32 %v1707, %v1767
      %v1800 = vmul.f32 %v1710, %v1768
      %v1801 = vmul.f32 %v1715, %v1769
      %v1802 = vmul.f32 %v1718, %v1770
      %v1803 = vmul.f32 %v1723, %v1771
      %v1804 = vmul.f32 %v1726, %v1772
      %v1805 = vmul.f32 %v1731, %v1773
      %v1806 = vmul.f32 %v1734, %v1774
      %v1807 = vmul.f32 %v1739, %v1775
      %v1808 = vmul.f32 %v1742, %v1776
      %1809 = vst.msk [vmem:[%s143] sm:$0xff] %vm269, %v1777
      %1810 = vst.msk [vmem:[%s143 + $0x8] sm:$0xff] %vm269, %v1778
      %1811 = vst.msk [vmem:[%s143 + $0x10] sm:$0xff] %vm269, %v1779
      %1812 = vst.msk [vmem:[%s143 + $0x18] sm:$0xff] %vm269, %v1780
      %1813 = vst.msk [vmem:[%s143 + $0x20] sm:$0xff] %vm269, %v1781
      %1814 = vst.msk [vmem:[%s143 + $0x28] sm:$0xff] %vm269, %v1782
      %1815 = vst.msk [vmem:[%s143 + $0x30] sm:$0xff] %vm269, %v1783
      %1816 = vst.msk [vmem:[%s143 + $0x38] sm:$0xff] %vm269, %v1784
      %1817 = vst.msk [vmem:[%s143 + $0x40] sm:$0xff] %vm269, %v1785
      %1818 = vst.msk [vmem:[%s143 + $0x48] sm:$0xff] %vm269, %v1786
      %1819 = vst.msk [vmem:[%s143 + $0x50] sm:$0xff] %vm269, %v1787
      %1820 = vst.msk [vmem:[%s143 + $0x58] sm:$0xff] %vm269, %v1788
      %1821 = vst.msk [vmem:[%s143 + $0x60] sm:$0xff] %vm269, %v1789
      %1822 = vst.msk [vmem:[%s143 + $0x68] sm:$0xff] %vm269, %v1790
      %1823 = vst.msk [vmem:[%s143 + $0x70] sm:$0xff] %vm269, %v1791
      %1824 = vst.msk [vmem:[%s143 + $0x78] sm:$0xff] %vm269, %v1792
      %1825 = vst.msk [vmem:[%s143 + $0x80] sm:$0xff] %vm269, %v1793
      %1826 = vst.msk [vmem:[%s143 + $0x88] sm:$0xff] %vm269, %v1794
      %1827 = vst.msk [vmem:[%s143 + $0x90] sm:$0xff] %vm269, %v1795
      %1828 = vst.msk [vmem:[%s143 + $0x98] sm:$0xff] %vm269, %v1796
      %1829 = vst.msk [vmem:[%s143 + $0xa0] sm:$0xff] %vm269, %v1797
      %1830 = vst.msk [vmem:[%s143 + $0xa8] sm:$0xff] %vm269, %v1798
      %1831 = vst.msk [vmem:[%s143 + $0xb0] sm:$0xff] %vm269, %v1799
      %1832 = vst.msk [vmem:[%s143 + $0xb8] sm:$0xff] %vm269, %v1800
      %1833 = vst.msk [vmem:[%s143 + $0xc0] sm:$0xff] %vm269, %v1801
      %1834 = vst.msk [vmem:[%s143 + $0xc8] sm:$0xff] %vm269, %v1802
      %1835 = vst.msk [vmem:[%s143 + $0xd0] sm:$0xff] %vm269, %v1803
      %1836 = vst.msk [vmem:[%s143 + $0xd8] sm:$0xff] %vm269, %v1804
      %1837 = vst.msk [vmem:[%s143 + $0xe0] sm:$0xff] %vm269, %v1805
      %1838 = vst.msk [vmem:[%s143 + $0xe8] sm:$0xff] %vm269, %v1806
      %1839 = vst.msk [vmem:[%s143 + $0xf0] sm:$0xff] %vm269, %v1807
      %1840 = vst.msk [vmem:[%s143 + $0xf8] sm:$0xff] %vm269, %v1808
      %p1841 = scmp.lt.s32.totalorder %s13, 1
      %s1842 = scalar_select %p1841, %s13, 1
      %s1843 = smul.addr %s1842, 32
      %s1844 = smul.addr %s1843, 8
      %s1845 = scalar_lea.vmem %s2, %s1844
      // Predicated region
      $region29: #{tpu_custom_call.1} parent=27 // pred_check
        %p1846 = pneg %p78
      $region30: #{tpu_custom_call.1} parent=27 // pred_check_branch
        %1848 = sbr.rel (%p1846) target = $region32
      $region31: #{tpu_custom_call.1} parent=27 // pred_region
        _
      $region32: #{tpu_custom_call.1} parent=27 // pred_fallthru
        _
    $region28: #{tpu_custom_call.1} parent=5 // pred_fallthru
      _
    %p1849 = scmp.le.s32.totalorder 2, %s8
    // Predicated region
    $region33: #{tpu_custom_call.1} parent=5 // pred_check
      %p1850 = pneg %p1849
    $region34: #{tpu_custom_call.1} parent=5 // pred_check_branch
      %1852 = sbr.rel (%p1850) target = $region36
    $region35: #{tpu_custom_call.1} parent=5 // pred_region
      %s1853 = ssub.s32 %s8, 2
      // Predicated region
      $region37: #{tpu_custom_call.1} parent=35 // pred_check
        %p1854 = pneg %p84
      $region38: #{tpu_custom_call.1} parent=35 // pred_check_branch
        %1856 = sbr.rel (%p1854) target = $region40
      $region39: #{tpu_custom_call.1} parent=35 // pred_region
        %p1857 = scmp.lt.s32.totalorder %s14, 1
        %s1858 = scalar_select %p1857, %s14, 1
        %s1859 = smul.addr %s1858, 32
        %s1860 = smul.addr %s1859, 8
        %s1861 = scalar_lea.vmem %s2, %s1860
      $region40: #{tpu_custom_call.1} parent=35 // pred_fallthru
        _
    $region36: #{tpu_custom_call.1} parent=5 // pred_fallthru
      _
  $region6: #{tpu_custom_call.1} parent=0 // loop_footer
    %s12 = sadd.s32 1, %s8
  $region7: #{tpu_custom_call.1} parent=0 // loop_footer_branch
    %7 = sbr.rel target = $region3
  $region8: #{tpu_custom_call.1} parent=0 // loop_exit
    _

</llo_original>
